<compile_context>
chip_gen: v6e
topology: v6e:2x2x1
jax: 0.10.0
libtpu: 0.0.40
codegen_flags: <defaults>
</compile_context>

<pallas_src>
import math

import jax
import jax.numpy as jnp
import numpy as np
from jax.experimental import pallas as pl
from jax.experimental.pallas import tpu as pltpu

LN_EPS = 1e-5          # PyTorch nn.LayerNorm default
NEG_INF = -1e30        # finite mask sentinel (safe under padding / batch blocking)


def _block_kernel(x_ref,
                  g1_ref, be1_ref,          # ln1 gamma/beta            (1, C)
                  wq_ref, bq_ref,           # per-head q proj (H, C, dk), (H, 1, dk)  [scale folded]
                  wk_ref, bk_ref,           # per-head k proj
                  wv_ref, bv_ref,           # per-head v proj
                  wo_ref, bo_ref,           # per-head out proj (H, dk, C), (1, C)
                  g2_ref, be2_ref,          # ln2 gamma/beta            (1, C)
                  w1_ref, b1_ref,           # l1^T (C, M), b1           (1, M)
                  w2_ref, b2_ref,           # l2^T (M, C), b2           (1, C)
                  o_ref):
    bp, T, C = x_ref.shape
    H = wq_ref.shape[0]
    R = bp * T                              # rows processed this grid step
    cdt = wq_ref.dtype                      # GEMM operand dtype (bf16)

    xf = x_ref[...].reshape(R, C).astype(jnp.float32)   # leading-dim merge only

    def layer_norm(h, g, b):
        # statistics in f32; normalized output cast to the GEMM operand dtype
        mu = jnp.mean(h, axis=-1, keepdims=True)
        var = jnp.mean((h - mu) ** 2, axis=-1, keepdims=True)
        nrm = (h - mu) * jax.lax.rsqrt(var + LN_EPS)
        return (nrm * g.astype(jnp.float32) + b.astype(jnp.float32)).astype(cdt)

    # ---- attention branch ----------------------------------------------------
    h1 = layer_norm(xf, g1_ref[...], be1_ref[...])                # (R, C)
    h1b = jnp.broadcast_to(h1[None, :, :], (H, R, C))             # hoisted once, reused 3x

    qh = jnp.einsum('hrc,hcd->hrd', h1b, wq_ref[...],
                    preferred_element_type=jnp.float32) + bq_ref[...].astype(jnp.float32)
    kh = jnp.einsum('hrc,hcd->hrd', h1b, wk_ref[...],
                    preferred_element_type=jnp.float32) + bk_ref[...].astype(jnp.float32)
    vh = jnp.einsum('hrc,hcd->hrd', h1b, wv_ref[...],
                    preferred_element_type=jnp.float32) + bv_ref[...].astype(jnp.float32)
    qh = qh.astype(cdt)                                            # 1/sqrt(dk) already in wq/bq
    kh = kh.astype(cdt)
    vh = vh.astype(cdt)

    s = jnp.einsum('hrd,hsd->hrs', qh, kh,
                   preferred_element_type=jnp.float32)             # (H, R, R)

    r_idx = jax.lax.broadcasted_iota(jnp.int32, (R, R), 0)
    s_idx = jax.lax.broadcasted_iota(jnp.int32, (R, R), 1)
    if bp == 1:
        mask = s_idx <= r_idx                                      # plain causal
    else:
        # block-diagonal causal mask: attend only within the same sequence
        mask = (s_idx <= r_idx) & ((r_idx // T) == (s_idx // T))
    s = jnp.where(mask[None, :, :], s, NEG_INF)

    m = jnp.max(s, axis=-1, keepdims=True)
    p = jnp.exp(s - m)
    denom = jnp.sum(p, axis=-1, keepdims=True)
    # approx reciprocal on the EUP: rows sum to 1 within ~1e-3 (fine for this block)
    p = p * pl.reciprocal(denom, approx=True)

    yh = jnp.einsum('hrs,hsd->hrd', p.astype(cdt), vh,
                    preferred_element_type=jnp.float32)             # (H, R, dk)
    # per-head out-projection + sum over heads == concat(heads) @ W_out
    per_head = jnp.einsum('hrd,hdc->hrc', yh.astype(cdt), wo_ref[...],
                          preferred_element_type=jnp.float32)       # (H, R, C)
    attn = jnp.sum(per_head, axis=0) + bo_ref[...].astype(jnp.float32)

    x1 = xf + attn                                                  # residual in f32

    # ---- MLP branch ------------------------------------------------------------
    h2 = layer_norm(x1, g2_ref[...], be2_ref[...])
    a = jnp.dot(h2, w1_ref[...], preferred_element_type=jnp.float32) \
        + b1_ref[...].astype(jnp.float32)
    a = jnp.maximum(a, 0.0).astype(cdt)
    mlp = jnp.dot(a, w2_ref[...], preferred_element_type=jnp.float32) \
        + b2_ref[...].astype(jnp.float32)

    o_ref[...] = (x1 + mlp).reshape(bp, T, C).astype(o_ref.dtype)


def block_forward(x, params, num_heads, *, compute_dtype=jnp.bfloat16, batch_block=None):
    B, T, C = x.shape
    H = num_heads
    assert C % H == 0
    dk = C // H
    M = params["w1_t"].shape[1]
    f32 = jnp.float32
    cdt = compute_dtype

    # batch elements per grid step: largest divisor of B keeping >= 2 steps (v7x TCs),
    # otherwise the whole batch in one step (amortize step overhead on v5e/v6e).
    if batch_block is None:
        if B >= 2:
            batch_block = next(c for c in range(B // 2, 0, -1) if B % c == 0)
        else:
            batch_block = max(B, 1)
    bp = batch_block
    assert B % bp == 0
    grid_b = B // bp

    # --- parameter prep (plain JAX, once): per-head weight layouts, scale fold, bf16 cast
    scale = 1.0 / math.sqrt(dk)
    win_t = params["win_t"].astype(f32)                 # (C, 3C)
    bin_ = params["bin"].astype(f32).reshape(3 * C)
    wq3 = (win_t[:, 0 * C:1 * C] * scale).reshape(C, H, dk).transpose(1, 0, 2).astype(cdt)
    wk3 = win_t[:, 1 * C:2 * C].reshape(C, H, dk).transpose(1, 0, 2).astype(cdt)
    wv3 = win_t[:, 2 * C:3 * C].reshape(C, H, dk).transpose(1, 0, 2).astype(cdt)
    bq3 = (bin_[0 * C:1 * C] * scale).reshape(H, 1, dk).astype(f32)
    bk3 = bin_[1 * C:2 * C].reshape(H, 1, dk).astype(f32)
    bv3 = bin_[2 * C:3 * C].reshape(H, 1, dk).astype(f32)
    wo3 = params["wout_t"].astype(cdt).reshape(H, dk, C)

    ordered = (
        params["g1"].astype(f32), params["be1"].astype(f32),
        wq3, bq3, wk3, bk3, wv3, bv3,
        wo3, params["bout"].astype(f32),
        params["g2"].astype(f32), params["be2"].astype(f32),
        params["w1_t"].astype(cdt), params["b1"].astype(f32),
        params["w2_t"].astype(cdt), params["b2"].astype(f32),
    )

    # --- VMEM budget: single-buffered weights counted once; f32 intermediates; IO blocks
    w_bytes = sum(int(np.prod(a.shape)) * a.dtype.itemsize for a in ordered)
    R = bp * T
    act_bytes = 4 * (H * R * C            # broadcast LN output
                     + 4 * H * R * dk      # q, k, v, y
                     + 2 * H * R * R       # scores + probs
                     + H * R * C           # per-head out projection
                     + 6 * R * C           # x, x1, h2, residual/out temps
                     + 2 * R * M           # mlp hidden
                     + R * R)              # mask
    io_bytes = 2 * 2 * bp * T * C * x.dtype.itemsize   # double-buffered x / out blocks
    try:
        cap = int(pltpu.get_tpu_info().vmem_capacity_bytes * 0.85)
    except Exception:
        cap = 48 << 20                     # safe on every generation (v7x has 64 MiB/TC)

    def vmem_limit(single_buffer_weights):
        wb = w_bytes if single_buffer_weights else 2 * w_bytes
        need = wb + 2 * act_bytes + io_bytes + (4 << 20)
        return int(min(max(need, 32 << 20), cap))

    cost = pl.CostEstimate(
        flops=int(2 * B * T * (4 * C * C + 2 * T * C + 2 * C * M)),
        transcendentals=int(B * H * T * T + 3 * B * T),
        bytes_accessed=int(2 * B * T * C * x.dtype.itemsize + w_bytes))

    def wspec(shape, single_buffer):
        n = len(shape)
        if single_buffer:
            # constant index map -> a second pipeline buffer is pure VMEM waste
            return pl.BlockSpec(shape, lambda b, _n=n: (0,) * _n,
                                pipeline_mode=pl.Buffered(1))
        return pl.BlockSpec(shape, lambda b, _n=n: (0,) * _n)

    def build(single_buffer_weights):
        return pl.pallas_call(
            _block_kernel,
            out_shape=jax.ShapeDtypeStruct((B, T, C), x.dtype),
            grid=(grid_b,),
            in_specs=[pl.BlockSpec((bp, T, C), lambda b: (b, 0, 0))]
                     + [wspec(a.shape, single_buffer_weights) for a in ordered],
            out_specs=pl.BlockSpec((bp, T, C), lambda b: (b, 0, 0)),
            compiler_params=pltpu.CompilerParams(
                dimension_semantics=("parallel",),
                vmem_limit_bytes=vmem_limit(single_buffer_weights)),
            cost_estimate=cost,
        )

    try:
        return build(True)(x, *ordered)
    except (TypeError, ValueError, NotImplementedError, pltpu.LoweringException):
        # pl.Buffered(1) rejected on this jax/libtpu: retry with default double-buffered
        # weights. Genuine kernel bugs reproduce here too and propagate from this attempt.
        return build(False)(x, *ordered)


def ref_block(x, p, num_heads):
    """Pure-JAX reference mirroring the PyTorch Block forward."""
    def ln(h, g, b):
        mu = h.mean(-1, keepdims=True)
        var = ((h - mu) ** 2).mean(-1, keepdims=True)
        return (h - mu) / jnp.sqrt(var + LN_EPS) * g + b

    B, T, C = x.shape
    dk = C // num_heads
    h = ln(x, p["g1"][0], p["be1"][0])
    qkv = h @ p["win_t"] + p["bin"][0]
    q, k, v = jnp.split(qkv, 3, axis=-1)
    q = q.reshape(B, T, num_heads, dk).transpose(0, 2, 1, 3)
    k = k.reshape(B, T, num_heads, dk).transpose(0, 2, 1, 3)
    v = v.reshape(B, T, num_heads, dk).transpose(0, 2, 1, 3)
    s = jnp.einsum("bhtd,bhsd->bhts", q, k) / math.sqrt(dk)
    mask = jnp.tril(jnp.ones((T, T), dtype=bool))
    s = jnp.where(mask, s, -jnp.inf)
    attn = jax.nn.softmax(s, axis=-1)
    y = jnp.einsum("bhts,bhsd->bhtd", attn, v).transpose(0, 2, 1, 3).reshape(B, T, C)
    x1 = x + y @ p["wout_t"] + p["bout"][0]
    h2 = ln(x1, p["g2"][0], p["be2"][0])
    mlp = jnp.maximum(h2 @ p["w1_t"] + p["b1"][0], 0.0) @ p["w2_t"] + p["b2"][0]
    return x1 + mlp


if __name__ == "__main__":
    # Small config consistent with the module: emb_dim=32, num_heads=4, mlp_dim=128,
    # use_bias=True, batch=2, seq=8. (Production configs should keep C, dk, M multiples
    # of 128 for lane-dense vregs and unmasked stores.)
    B, T, C, H, M = 2, 8, 32, 4, 128

    key = jax.random.PRNGKey(0)
    ks = jax.random.split(key, 10)
    scale = 0.02
    params = {
        "g1":     jnp.ones((1, C), jnp.float32),
        "be1":    jnp.zeros((1, C), jnp.float32),
        "win_t":  scale * jax.random.normal(ks[0], (C, 3 * C), jnp.float32),
        "bin":    scale * jax.random.normal(ks[1], (1, 3 * C), jnp.float32),
        "wout_t": scale * jax.random.normal(ks[2], (C, C), jnp.float32),
        "bout":   scale * jax.random.normal(ks[3], (1, C), jnp.float32),
        "g2":     jnp.ones((1, C), jnp.float32),
        "be2":    jnp.zeros((1, C), jnp.float32),
        "w1_t":   scale * jax.random.normal(ks[4], (C, M), jnp.float32),
        "b1":     scale * jax.random.normal(ks[5], (1, M), jnp.float32),
        "w2_t":   scale * jax.random.normal(ks[6], (M, C), jnp.float32),
        "b2":     scale * jax.random.normal(ks[7], (1, C), jnp.float32),
    }
    x = jax.random.normal(ks[8], (B, T, C), jnp.float32)

    out = block_forward(x, params, num_heads=H)
    out = jax.block_until_ready(out)

    ref = jax.block_until_ready(ref_block(x, params, num_heads=H))
    np.testing.assert_allclose(np.asarray(out), np.asarray(ref), rtol=1e-2, atol=1e-2)

    print("KERNEL_OK")
</pallas_src>

<mosaic_0001>
module attributes {stable_mosaic.version = 11 : i64} {
  func.func @_block_kernel(%arg0: i32, %arg1: memref<1x8x32xf32, #tpu.memory_space<vmem>>, %arg2: memref<1x32xf32, #tpu.memory_space<vmem>>, %arg3: memref<1x32xf32, #tpu.memory_space<vmem>>, %arg4: memref<4x32x8xbf16, #tpu.memory_space<vmem>>, %arg5: memref<4x1x8xf32, #tpu.memory_space<vmem>>, %arg6: memref<4x32x8xbf16, #tpu.memory_space<vmem>>, %arg7: memref<4x1x8xf32, #tpu.memory_space<vmem>>, %arg8: memref<4x32x8xbf16, #tpu.memory_space<vmem>>, %arg9: memref<4x1x8xf32, #tpu.memory_space<vmem>>, %arg10: memref<4x8x32xbf16, #tpu.memory_space<vmem>>, %arg11: memref<1x32xf32, #tpu.memory_space<vmem>>, %arg12: memref<1x32xf32, #tpu.memory_space<vmem>>, %arg13: memref<1x32xf32, #tpu.memory_space<vmem>>, %arg14: memref<32x128xbf16, #tpu.memory_space<vmem>>, %arg15: memref<1x128xf32, #tpu.memory_space<vmem>>, %arg16: memref<128x32xbf16, #tpu.memory_space<vmem>>, %arg17: memref<1x32xf32, #tpu.memory_space<vmem>>, %arg18: memref<1x8x32xf32, #tpu.memory_space<vmem>>) attributes {dimension_semantics = [#tpu.dimension_semantics<parallel>], iteration_bounds = array<i64: 2>, scalar_prefetch = 0 : i64, scratch_operands = 0 : i64, tpu.core_type = #tpu.core_type<tc>, window_params = [{transform_indices = @transform_0, window_bounds = array<i64: 1, 8, 32>}, {pipeline_mode = #tpu.pipeline_mode<synchronous>, transform_indices = @transform_1, window_bounds = array<i64: 1, 32>}, {pipeline_mode = #tpu.pipeline_mode<synchronous>, transform_indices = @transform_2, window_bounds = array<i64: 1, 32>}, {pipeline_mode = #tpu.pipeline_mode<synchronous>, transform_indices = @transform_3, window_bounds = array<i64: 4, 32, 8>}, {pipeline_mode = #tpu.pipeline_mode<synchronous>, transform_indices = @transform_4, window_bounds = array<i64: 4, 1, 8>}, {pipeline_mode = #tpu.pipeline_mode<synchronous>, transform_indices = @transform_5, window_bounds = array<i64: 4, 32, 8>}, {pipeline_mode = #tpu.pipeline_mode<synchronous>, transform_indices = @transform_6, window_bounds = array<i64: 4, 1, 8>}, {pipeline_mode = #tpu.pipeline_mode<synchronous>, transform_indices = @transform_7, window_bounds = array<i64: 4, 32, 8>}, {pipeline_mode = #tpu.pipeline_mode<synchronous>, transform_indices = @transform_8, window_bounds = array<i64: 4, 1, 8>}, {pipeline_mode = #tpu.pipeline_mode<synchronous>, transform_indices = @transform_9, window_bounds = array<i64: 4, 8, 32>}, {pipeline_mode = #tpu.pipeline_mode<synchronous>, transform_indices = @transform_10, window_bounds = array<i64: 1, 32>}, {pipeline_mode = #tpu.pipeline_mode<synchronous>, transform_indices = @transform_11, window_bounds = array<i64: 1, 32>}, {pipeline_mode = #tpu.pipeline_mode<synchronous>, transform_indices = @transform_12, window_bounds = array<i64: 1, 32>}, {pipeline_mode = #tpu.pipeline_mode<synchronous>, transform_indices = @transform_13, window_bounds = array<i64: 32, 128>}, {pipeline_mode = #tpu.pipeline_mode<synchronous>, transform_indices = @transform_14, window_bounds = array<i64: 1, 128>}, {pipeline_mode = #tpu.pipeline_mode<synchronous>, transform_indices = @transform_15, window_bounds = array<i64: 128, 32>}, {pipeline_mode = #tpu.pipeline_mode<synchronous>, transform_indices = @transform_16, window_bounds = array<i64: 1, 32>}, {transform_indices = @transform_17, window_bounds = array<i64: 1, 8, 32>}]} {
    %c0 = arith.constant 0 : index
    %c0_0 = arith.constant 0 : index
    %c0_1 = arith.constant 0 : index
    %0 = vector.load %arg1[%c0, %c0_0, %c0_1] : memref<1x8x32xf32, #tpu.memory_space<vmem>>, vector<1x8x32xf32>
    %1 = vector.shape_cast %0 : vector<1x8x32xf32> to vector<8x32xf32>
    %c0_2 = arith.constant 0 : index
    %c0_3 = arith.constant 0 : index
    %2 = vector.load %arg2[%c0_2, %c0_3] : memref<1x32xf32, #tpu.memory_space<vmem>>, vector<1x32xf32>
    %c0_4 = arith.constant 0 : index
    %c0_5 = arith.constant 0 : index
    %3 = vector.load %arg3[%c0_4, %c0_5] : memref<1x32xf32, #tpu.memory_space<vmem>>, vector<1x32xf32>
    %cst = arith.constant dense<0.000000e+00> : vector<8xf32>
    %4 = vector.multi_reduction <add>, %1, %cst [1] : vector<8x32xf32> to vector<8xf32>
    %5 = vector.shape_cast %4 : vector<8xf32> to vector<8x1xf32>
    %cst_6 = arith.constant 3.200000e+01 : f32
    %6 = vector.broadcast %cst_6 : f32 to vector<8x1xf32>
    %7 = arith.divf %5, %6 : vector<8x1xf32>
    %8 = vector.broadcast %7 : vector<8x1xf32> to vector<8x32xf32>
    %9 = arith.subf %1, %8 : vector<8x32xf32>
    %10 = arith.mulf %9, %9 : vector<8x32xf32>
    %cst_7 = arith.constant dense<0.000000e+00> : vector<8xf32>
    %11 = vector.multi_reduction <add>, %10, %cst_7 [1] : vector<8x32xf32> to vector<8xf32>
    %12 = vector.shape_cast %11 : vector<8xf32> to vector<8x1xf32>
    %cst_8 = arith.constant 3.200000e+01 : f32
    %13 = vector.broadcast %cst_8 : f32 to vector<8x1xf32>
    %14 = arith.divf %12, %13 : vector<8x1xf32>
    %15 = vector.broadcast %7 : vector<8x1xf32> to vector<8x32xf32>
    %16 = arith.subf %1, %15 : vector<8x32xf32>
    %cst_9 = arith.constant 9.99999974E-6 : f32
    %17 = vector.broadcast %cst_9 : f32 to vector<8x1xf32>
    %18 = arith.addf %14, %17 : vector<8x1xf32>
    %19 = math.rsqrt %18 : vector<8x1xf32>
    %20 = vector.broadcast %19 : vector<8x1xf32> to vector<8x32xf32>
    %21 = arith.mulf %16, %20 : vector<8x32xf32>
    %22 = vector.broadcast %2 : vector<1x32xf32> to vector<8x32xf32>
    %23 = arith.mulf %21, %22 : vector<8x32xf32>
    %24 = vector.broadcast %3 : vector<1x32xf32> to vector<8x32xf32>
    %25 = arith.addf %23, %24 : vector<8x32xf32>
    %26 = arith.truncf %25 : vector<8x32xf32> to vector<8x32xbf16>
    %27 = vector.shape_cast %26 : vector<8x32xbf16> to vector<1x8x32xbf16>
    %28 = vector.shape_cast %27 : vector<1x8x32xbf16> to vector<1x8x32xbf16>
    %29 = vector.broadcast %28 : vector<1x8x32xbf16> to vector<4x8x32xbf16>
    %c0_10 = arith.constant 0 : index
    %c0_11 = arith.constant 0 : index
    %c0_12 = arith.constant 0 : index
    %30 = vector.load %arg4[%c0_10, %c0_11, %c0_12] : memref<4x32x8xbf16, #tpu.memory_space<vmem>>, vector<4x32x8xbf16>
    "tpu.trace_start"() <{level = 10 : i32, message = "hrc,hcd->hrd"}> : () -> ()
    %cst_13 = arith.constant dense<0.000000e+00> : vector<4x8x8xf32>
    %31 = tpu.matmul %29, %30, %cst_13 {dimension_numbers = #tpu.dot_dimension_numbers<[2], [1], [1], [2], [0, 0, 0, 1, 1, 2], [0], [0]>} : vector<4x8x32xbf16>, vector<4x32x8xbf16>, vector<4x8x8xf32> -> vector<4x8x8xf32>
    "tpu.trace_stop"() : () -> ()
    %c0_14 = arith.constant 0 : index
    %c0_15 = arith.constant 0 : index
    %c0_16 = arith.constant 0 : index
    %32 = vector.load %arg5[%c0_14, %c0_15, %c0_16] : memref<4x1x8xf32, #tpu.memory_space<vmem>>, vector<4x1x8xf32>
    %33 = vector.broadcast %32 : vector<4x1x8xf32> to vector<4x8x8xf32>
    %34 = arith.addf %31, %33 : vector<4x8x8xf32>
    %c0_17 = arith.constant 0 : index
    %c0_18 = arith.constant 0 : index
    %c0_19 = arith.constant 0 : index
    %35 = vector.load %arg6[%c0_17, %c0_18, %c0_19] : memref<4x32x8xbf16, #tpu.memory_space<vmem>>, vector<4x32x8xbf16>
    "tpu.trace_start"() <{level = 10 : i32, message = "hrc,hcd->hrd"}> : () -> ()
    %cst_20 = arith.constant dense<0.000000e+00> : vector<4x8x8xf32>
    %36 = tpu.matmul %29, %35, %cst_20 {dimension_numbers = #tpu.dot_dimension_numbers<[2], [1], [1], [2], [0, 0, 0, 1, 1, 2], [0], [0]>} : vector<4x8x32xbf16>, vector<4x32x8xbf16>, vector<4x8x8xf32> -> vector<4x8x8xf32>
    "tpu.trace_stop"() : () -> ()
    %c0_21 = arith.constant 0 : index
    %c0_22 = arith.constant 0 : index
    %c0_23 = arith.constant 0 : index
    %37 = vector.load %arg7[%c0_21, %c0_22, %c0_23] : memref<4x1x8xf32, #tpu.memory_space<vmem>>, vector<4x1x8xf32>
    %38 = vector.broadcast %37 : vector<4x1x8xf32> to vector<4x8x8xf32>
    %39 = arith.addf %36, %38 : vector<4x8x8xf32>
    %c0_24 = arith.constant 0 : index
    %c0_25 = arith.constant 0 : index
    %c0_26 = arith.constant 0 : index
    %40 = vector.load %arg8[%c0_24, %c0_25, %c0_26] : memref<4x32x8xbf16, #tpu.memory_space<vmem>>, vector<4x32x8xbf16>
    "tpu.trace_start"() <{level = 10 : i32, message = "hrc,hcd->hrd"}> : () -> ()
    %cst_27 = arith.constant dense<0.000000e+00> : vector<4x8x8xf32>
    %41 = tpu.matmul %29, %40, %cst_27 {dimension_numbers = #tpu.dot_dimension_numbers<[2], [1], [1], [2], [0, 0, 0, 1, 1, 2], [0], [0]>} : vector<4x8x32xbf16>, vector<4x32x8xbf16>, vector<4x8x8xf32> -> vector<4x8x8xf32>
    "tpu.trace_stop"() : () -> ()
    %c0_28 = arith.constant 0 : index
    %c0_29 = arith.constant 0 : index
    %c0_30 = arith.constant 0 : index
    %42 = vector.load %arg9[%c0_28, %c0_29, %c0_30] : memref<4x1x8xf32, #tpu.memory_space<vmem>>, vector<4x1x8xf32>
    %43 = vector.broadcast %42 : vector<4x1x8xf32> to vector<4x8x8xf32>
    %44 = arith.addf %41, %43 : vector<4x8x8xf32>
    %45 = arith.truncf %34 : vector<4x8x8xf32> to vector<4x8x8xbf16>
    %46 = arith.truncf %39 : vector<4x8x8xf32> to vector<4x8x8xbf16>
    %47 = arith.truncf %44 : vector<4x8x8xf32> to vector<4x8x8xbf16>
    "tpu.trace_start"() <{level = 10 : i32, message = "hrd,hsd->hrs"}> : () -> ()
    %cst_31 = arith.constant dense<0.000000e+00> : vector<4x8x8xf32>
    %48 = tpu.matmul %45, %46, %cst_31 {dimension_numbers = #tpu.dot_dimension_numbers<[2], [2], [1], [1], [0, 0, 0, 1, 1, 1], [0], [0]>} : vector<4x8x8xbf16>, vector<4x8x8xbf16>, vector<4x8x8xf32> -> vector<4x8x8xf32>
    "tpu.trace_stop"() : () -> ()
    %49 = tpu.iota {dimensions = array<i32: 0>} : vector<8x8xi32>
    %50 = tpu.iota {dimensions = array<i32: 1>} : vector<8x8xi32>
    %51 = arith.cmpi sle, %50, %49 : vector<8x8xi32>
    %52 = vector.shape_cast %51 : vector<8x8xi1> to vector<1x8x8xi1>
    %cst_32 = arith.constant -1.000000e+30 : f32
    %53 = vector.shape_cast %52 : vector<1x8x8xi1> to vector<1x8x8xi1>
    %54 = vector.broadcast %53 : vector<1x8x8xi1> to vector<4x8x8xi1>
    %55 = vector.broadcast %cst_32 : f32 to vector<4x8x8xf32>
    %56 = arith.select %54, %48, %55 : vector<4x8x8xi1>, vector<4x8x8xf32>
    %cst_33 = arith.constant dense<0xFF800000> : vector<4x8xf32>
    %57 = vector.multi_reduction <maximumf>, %56, %cst_33 [2] : vector<4x8x8xf32> to vector<4x8xf32>
    %58 = vector.shape_cast %57 : vector<4x8xf32> to vector<4x8x1xf32>
    %59 = vector.broadcast %58 : vector<4x8x1xf32> to vector<4x8x8xf32>
    %60 = arith.subf %56, %59 : vector<4x8x8xf32>
    %61 = math.exp %60 : vector<4x8x8xf32>
    %cst_34 = arith.constant dense<0.000000e+00> : vector<4x8xf32>
    %62 = vector.multi_reduction <add>, %61, %cst_34 [2] : vector<4x8x8xf32> to vector<4x8xf32>
    %63 = vector.shape_cast %62 : vector<4x8xf32> to vector<4x8x1xf32>
    %64 = tpu.reciprocal %63 {approx = true} : vector<4x8x1xf32> -> vector<4x8x1xf32>
    %65 = vector.broadcast %64 : vector<4x8x1xf32> to vector<4x8x8xf32>
    %66 = arith.mulf %61, %65 : vector<4x8x8xf32>
    %67 = arith.truncf %66 : vector<4x8x8xf32> to vector<4x8x8xbf16>
    "tpu.trace_start"() <{level = 10 : i32, message = "hrs,hsd->hrd"}> : () -> ()
    %cst_35 = arith.constant dense<0.000000e+00> : vector<4x8x8xf32>
    %68 = tpu.matmul %67, %47, %cst_35 {dimension_numbers = #tpu.dot_dimension_numbers<[2], [1], [1], [2], [0, 0, 0, 1, 1, 2], [0], [0]>} : vector<4x8x8xbf16>, vector<4x8x8xbf16>, vector<4x8x8xf32> -> vector<4x8x8xf32>
    "tpu.trace_stop"() : () -> ()
    %69 = arith.truncf %68 : vector<4x8x8xf32> to vector<4x8x8xbf16>
    %c0_36 = arith.constant 0 : index
    %c0_37 = arith.constant 0 : index
    %c0_38 = arith.constant 0 : index
    %70 = vector.load %arg10[%c0_36, %c0_37, %c0_38] : memref<4x8x32xbf16, #tpu.memory_space<vmem>>, vector<4x8x32xbf16>
    "tpu.trace_start"() <{level = 10 : i32, message = "hrd,hdc->hrc"}> : () -> ()
    %cst_39 = arith.constant dense<0.000000e+00> : vector<4x8x32xf32>
    %71 = tpu.matmul %69, %70, %cst_39 {dimension_numbers = #tpu.dot_dimension_numbers<[2], [1], [1], [2], [0, 0, 0, 1, 1, 2], [0], [0]>} : vector<4x8x8xbf16>, vector<4x8x32xbf16>, vector<4x8x32xf32> -> vector<4x8x32xf32>
    "tpu.trace_stop"() : () -> ()
    %cst_40 = arith.constant dense<0.000000e+00> : vector<8x32xf32>
    %72 = vector.multi_reduction <add>, %71, %cst_40 [0] : vector<4x8x32xf32> to vector<8x32xf32>
    %c0_41 = arith.constant 0 : index
    %c0_42 = arith.constant 0 : index
    %73 = vector.load %arg11[%c0_41, %c0_42] : memref<1x32xf32, #tpu.memory_space<vmem>>, vector<1x32xf32>
    %74 = vector.broadcast %73 : vector<1x32xf32> to vector<8x32xf32>
    %75 = arith.addf %72, %74 : vector<8x32xf32>
    %76 = arith.addf %1, %75 : vector<8x32xf32>
    %c0_43 = arith.constant 0 : index
    %c0_44 = arith.constant 0 : index
    %77 = vector.load %arg12[%c0_43, %c0_44] : memref<1x32xf32, #tpu.memory_space<vmem>>, vector<1x32xf32>
    %c0_45 = arith.constant 0 : index
    %c0_46 = arith.constant 0 : index
    %78 = vector.load %arg13[%c0_45, %c0_46] : memref<1x32xf32, #tpu.memory_space<vmem>>, vector<1x32xf32>
    %cst_47 = arith.constant dense<0.000000e+00> : vector<8xf32>
    %79 = vector.multi_reduction <add>, %76, %cst_47 [1] : vector<8x32xf32> to vector<8xf32>
    %80 = vector.shape_cast %79 : vector<8xf32> to vector<8x1xf32>
    %cst_48 = arith.constant 3.200000e+01 : f32
    %81 = vector.broadcast %cst_48 : f32 to vector<8x1xf32>
    %82 = arith.divf %80, %81 : vector<8x1xf32>
    %83 = vector.broadcast %82 : vector<8x1xf32> to vector<8x32xf32>
    %84 = arith.subf %76, %83 : vector<8x32xf32>
    %85 = arith.mulf %84, %84 : vector<8x32xf32>
    %cst_49 = arith.constant dense<0.000000e+00> : vector<8xf32>
    %86 = vector.multi_reduction <add>, %85, %cst_49 [1] : vector<8x32xf32> to vector<8xf32>
    %87 = vector.shape_cast %86 : vector<8xf32> to vector<8x1xf32>
    %cst_50 = arith.constant 3.200000e+01 : f32
    %88 = vector.broadcast %cst_50 : f32 to vector<8x1xf32>
    %89 = arith.divf %87, %88 : vector<8x1xf32>
    %90 = vector.broadcast %82 : vector<8x1xf32> to vector<8x32xf32>
    %91 = arith.subf %76, %90 : vector<8x32xf32>
    %cst_51 = arith.constant 9.99999974E-6 : f32
    %92 = vector.broadcast %cst_51 : f32 to vector<8x1xf32>
    %93 = arith.addf %89, %92 : vector<8x1xf32>
    %94 = math.rsqrt %93 : vector<8x1xf32>
    %95 = vector.broadcast %94 : vector<8x1xf32> to vector<8x32xf32>
    %96 = arith.mulf %91, %95 : vector<8x32xf32>
    %97 = vector.broadcast %77 : vector<1x32xf32> to vector<8x32xf32>
    %98 = arith.mulf %96, %97 : vector<8x32xf32>
    %99 = vector.broadcast %78 : vector<1x32xf32> to vector<8x32xf32>
    %100 = arith.addf %98, %99 : vector<8x32xf32>
    %101 = arith.truncf %100 : vector<8x32xf32> to vector<8x32xbf16>
    %c0_52 = arith.constant 0 : index
    %c0_53 = arith.constant 0 : index
    %102 = vector.load %arg14[%c0_52, %c0_53] : memref<32x128xbf16, #tpu.memory_space<vmem>>, vector<32x128xbf16>
    %cst_54 = arith.constant dense<0.000000e+00> : vector<8x128xf32>
    %103 = tpu.matmul %101, %102, %cst_54 {dimension_numbers = #tpu.dot_dimension_numbers<[1], [0], [0], [1], [0, 0, 1, 1], [], []>} : vector<8x32xbf16>, vector<32x128xbf16>, vector<8x128xf32> -> vector<8x128xf32>
    %c0_55 = arith.constant 0 : index
    %c0_56 = arith.constant 0 : index
    %104 = vector.load %arg15[%c0_55, %c0_56] : memref<1x128xf32, #tpu.memory_space<vmem>>, vector<1x128xf32>
    %105 = vector.broadcast %104 : vector<1x128xf32> to vector<8x128xf32>
    %106 = arith.addf %103, %105 : vector<8x128xf32>
    %cst_57 = arith.constant 0.000000e+00 : f32
    %107 = vector.broadcast %cst_57 : f32 to vector<8x128xf32>
    %108 = arith.maximumf %106, %107 : vector<8x128xf32>
    %109 = arith.truncf %108 : vector<8x128xf32> to vector<8x128xbf16>
    %c0_58 = arith.constant 0 : index
    %c0_59 = arith.constant 0 : index
    %110 = vector.load %arg16[%c0_58, %c0_59] : memref<128x32xbf16, #tpu.memory_space<vmem>>, vector<128x32xbf16>
    %cst_60 = arith.constant dense<0.000000e+00> : vector<8x32xf32>
    %111 = tpu.matmul %109, %110, %cst_60 {dimension_numbers = #tpu.dot_dimension_numbers<[1], [0], [0], [1], [0, 0, 1, 1], [], []>} : vector<8x128xbf16>, vector<128x32xbf16>, vector<8x32xf32> -> vector<8x32xf32>
    %c0_61 = arith.constant 0 : index
    %c0_62 = arith.constant 0 : index
    %112 = vector.load %arg17[%c0_61, %c0_62] : memref<1x32xf32, #tpu.memory_space<vmem>>, vector<1x32xf32>
    %113 = vector.broadcast %112 : vector<1x32xf32> to vector<8x32xf32>
    %114 = arith.addf %111, %113 : vector<8x32xf32>
    %115 = arith.addf %76, %114 : vector<8x32xf32>
    %116 = vector.shape_cast %115 : vector<8x32xf32> to vector<1x8x32xf32>
    %c0_63 = arith.constant 0 : index
    %c0_64 = arith.constant 0 : index
    %c0_65 = arith.constant 0 : index
    %117 = vector.load %arg18[%c0_63, %c0_64, %c0_65] : memref<1x8x32xf32, #tpu.memory_space<vmem>>, vector<1x8x32xf32>
    tpu.vector_store %arg18[%c0_63, %c0_64, %c0_65], %116 {strides = array<i32>} : memref<1x8x32xf32, #tpu.memory_space<vmem>>, vector<1x8x32xf32>,
    return
  }
  func.func @transform_0(%arg0: i32) -> (i32, i32, i32) {
    %c0_i32 = arith.constant 0 : i32
    %c0_i32_0 = arith.constant 0 : i32
    %c0_i32_1 = arith.constant 0 : i32
    return %arg0, %c0_i32, %c0_i32_0 : i32, i32, i32
  }
  func.func @transform_1(%arg0: i32) -> (i32, i32) {
    %c0_i32 = arith.constant 0 : i32
    %c0_i32_0 = arith.constant 0 : i32
    %c0_i32_1 = arith.constant 0 : i32
    return %c0_i32, %c0_i32_0 : i32, i32
  }
  func.func @transform_2(%arg0: i32) -> (i32, i32) {
    %c0_i32 = arith.constant 0 : i32
    %c0_i32_0 = arith.constant 0 : i32
    %c0_i32_1 = arith.constant 0 : i32
    return %c0_i32, %c0_i32_0 : i32, i32
  }
  func.func @transform_3(%arg0: i32) -> (i32, i32, i32) {
    %c0_i32 = arith.constant 0 : i32
    %c0_i32_0 = arith.constant 0 : i32
    %c0_i32_1 = arith.constant 0 : i32
    %c0_i32_2 = arith.constant 0 : i32
    return %c0_i32, %c0_i32_0, %c0_i32_1 : i32, i32, i32
  }
  func.func @transform_4(%arg0: i32) -> (i32, i32, i32) {
    %c0_i32 = arith.constant 0 : i32
    %c0_i32_0 = arith.constant 0 : i32
    %c0_i32_1 = arith.constant 0 : i32
    %c0_i32_2 = arith.constant 0 : i32
    return %c0_i32, %c0_i32_0, %c0_i32_1 : i32, i32, i32
  }
  func.func @transform_5(%arg0: i32) -> (i32, i32, i32) {
    %c0_i32 = arith.constant 0 : i32
    %c0_i32_0 = arith.constant 0 : i32
    %c0_i32_1 = arith.constant 0 : i32
    %c0_i32_2 = arith.constant 0 : i32
    return %c0_i32, %c0_i32_0, %c0_i32_1 : i32, i32, i32
  }
  func.func @transform_6(%arg0: i32) -> (i32, i32, i32) {
    %c0_i32 = arith.constant 0 : i32
    %c0_i32_0 = arith.constant 0 : i32
    %c0_i32_1 = arith.constant 0 : i32
    %c0_i32_2 = arith.constant 0 : i32
    return %c0_i32, %c0_i32_0, %c0_i32_1 : i32, i32, i32
  }
  func.func @transform_7(%arg0: i32) -> (i32, i32, i32) {
    %c0_i32 = arith.constant 0 : i32
    %c0_i32_0 = arith.constant 0 : i32
    %c0_i32_1 = arith.constant 0 : i32
    %c0_i32_2 = arith.constant 0 : i32
    return %c0_i32, %c0_i32_0, %c0_i32_1 : i32, i32, i32
  }
  func.func @transform_8(%arg0: i32) -> (i32, i32, i32) {
    %c0_i32 = arith.constant 0 : i32
    %c0_i32_0 = arith.constant 0 : i32
    %c0_i32_1 = arith.constant 0 : i32
    %c0_i32_2 = arith.constant 0 : i32
    return %c0_i32, %c0_i32_0, %c0_i32_1 : i32, i32, i32
  }
  func.func @transform_9(%arg0: i32) -> (i32, i32, i32) {
    %c0_i32 = arith.constant 0 : i32
    %c0_i32_0 = arith.constant 0 : i32
    %c0_i32_1 = arith.constant 0 : i32
    %c0_i32_2 = arith.constant 0 : i32
    return %c0_i32, %c0_i32_0, %c0_i32_1 : i32, i32, i32
  }
  func.func @transform_10(%arg0: i32) -> (i32, i32) {
    %c0_i32 = arith.constant 0 : i32
    %c0_i32_0 = arith.constant 0 : i32
    %c0_i32_1 = arith.constant 0 : i32
    return %c0_i32, %c0_i32_0 : i32, i32
  }
  func.func @transform_11(%arg0: i32) -> (i32, i32) {
    %c0_i32 = arith.constant 0 : i32
    %c0_i32_0 = arith.constant 0 : i32
    %c0_i32_1 = arith.constant 0 : i32
    return %c0_i32, %c0_i32_0 : i32, i32
  }
  func.func @transform_12(%arg0: i32) -> (i32, i32) {
    %c0_i32 = arith.constant 0 : i32
    %c0_i32_0 = arith.constant 0 : i32
    %c0_i32_1 = arith.constant 0 : i32
    return %c0_i32, %c0_i32_0 : i32, i32
  }
  func.func @transform_13(%arg0: i32) -> (i32, i32) {
    %c0_i32 = arith.constant 0 : i32
    %c0_i32_0 = arith.constant 0 : i32
    %c0_i32_1 = arith.constant 0 : i32
    return %c0_i32, %c0_i32_0 : i32, i32
  }
  func.func @transform_14(%arg0: i32) -> (i32, i32) {
    %c0_i32 = arith.constant 0 : i32
    %c0_i32_0 = arith.constant 0 : i32
    %c0_i32_1 = arith.constant 0 : i32
    return %c0_i32, %c0_i32_0 : i32, i32
  }
  func.func @transform_15(%arg0: i32) -> (i32, i32) {
    %c0_i32 = arith.constant 0 : i32
    %c0_i32_0 = arith.constant 0 : i32
    %c0_i32_1 = arith.constant 0 : i32
    return %c0_i32, %c0_i32_0 : i32, i32
  }
  func.func @transform_16(%arg0: i32) -> (i32, i32) {
    %c0_i32 = arith.constant 0 : i32
    %c0_i32_0 = arith.constant 0 : i32
    %c0_i32_1 = arith.constant 0 : i32
    return %c0_i32, %c0_i32_0 : i32, i32
  }
  func.func @transform_17(%arg0: i32) -> (i32, i32, i32) {
    %c0_i32 = arith.constant 0 : i32
    %c0_i32_0 = arith.constant 0 : i32
    %c0_i32_1 = arith.constant 0 : i32
    return %arg0, %c0_i32, %c0_i32_0 : i32, i32, i32
  }
}

</mosaic_0001>

<llo_original>
// kernel: tpu_custom_call.1
$region0: #{tpu_custom_call.1}
  #allocation0 [shape = 'u32[]', space=smem, size = 0x4, offset = 0x4, fixed_abs, tag = 'smem constant byte address 0x4 - core index']
  #allocation1 [shape = 'u32[144,128]{1,0:T(1,128)}', space=vmem, size = 0x12000, scoped, tag = 'internal scratch']
  %s0 = inlined_call_operand.vmem [shape: f32[2,8,32], index: 0, kind: input, shape index: {}]
  %s1 = inlined_call_operand.vmem [shape: f32[1,32], index: 1, kind: input, shape index: {}]
  %s2 = inlined_call_operand.vmem [shape: f32[1,32], index: 2, kind: input, shape index: {}]
  %s3 = inlined_call_operand.vmem [shape: bf16[4,32,8], index: 3, kind: input, shape index: {}]
  %s4 = inlined_call_operand.vmem [shape: f32[4,1,8], index: 4, kind: input, shape index: {}]
  %s5 = inlined_call_operand.vmem [shape: bf16[4,32,8], index: 5, kind: input, shape index: {}]
  %s6 = inlined_call_operand.vmem [shape: f32[4,1,8], index: 6, kind: input, shape index: {}]
  %s7 = inlined_call_operand.vmem [shape: bf16[4,32,8], index: 7, kind: input, shape index: {}]
  %s8 = inlined_call_operand.vmem [shape: f32[4,1,8], index: 8, kind: input, shape index: {}]
  %s9 = inlined_call_operand.vmem [shape: bf16[4,8,32], index: 9, kind: input, shape index: {}]
  %s10 = inlined_call_operand.vmem [shape: f32[1,32], index: 10, kind: input, shape index: {}]
  %s11 = inlined_call_operand.vmem [shape: f32[1,32], index: 11, kind: input, shape index: {}]
  %s12 = inlined_call_operand.vmem [shape: f32[1,32], index: 12, kind: input, shape index: {}]
  %s13 = inlined_call_operand.vmem [shape: bf16[32,128], index: 13, kind: input, shape index: {}]
  %s14 = inlined_call_operand.vmem [shape: f32[1,128], index: 14, kind: input, shape index: {}]
  %s15 = inlined_call_operand.vmem [shape: bf16[128,32], index: 15, kind: input, shape index: {}]
  %s16 = inlined_call_operand.vmem [shape: f32[1,32], index: 16, kind: input, shape index: {}]
  %s17 = inlined_call_operand.hbm [shape: f32[2,8,32], index: 17, kind: output, shape index: {}]
  %s18 = sld [smem:[#allocation0]]
  $region101: #{tpu_custom_call.1} parent=0
    _
  %s20 = ssub.s32 1, %s18
  %s21 = scalar_select 0, %s20, %s18
  $region1: #{tpu_custom_call.1} parent=0
    #allocation2 [shape = 'u8[8192]{0}', space=vmem, size = 0x2000, scoped, tag = 'output window, operand 0']
    #allocation3 [shape = 's32[2]{0}', space=sflag, size = 0x8, scoped, tag = 'scoped memory for tpu_custom_call.1']
    %22 = vsyncpa [#allocation3], 0
    %s23 = scalar_lea.sflag [#allocation3], 1
    %24 = vsyncpa %s23, 0
    loop: start=0, step=1, limit=4
    $region2: #{tpu_custom_call.1} parent=1 // loop_pre_header
      _
    $region3: #{tpu_custom_call.1} parent=1 // loop_header
      %s26 = sphi 0, %s30
      %p27 = scmp.ge.s32.totalorder %s26, 4
      %s36 = sphi 0, %s38
      %s39 = sphi 0, %s36
      %s40 = sphi 0, %s39
      %s56 = sphi 0, %s40
      %s60 = sphi 0, %s60
      %s62 = sphi 0, %s60
      %s63 = sphi 0, %s62
      %s77 = sphi 0, %s63
      %s81 = sphi 0, %s81
      %s83 = sphi 0, %s81
      %s84 = sphi 0, %s83
      %s98 = sphi 0, %s84
      %s102 = sphi 0, %s102
      %s104 = sphi 0, %s102
      %s105 = sphi 0, %s104
      %s119 = sphi 0, %s105
      %s123 = sphi 0, %s123
      %s125 = sphi 0, %s123
      %s126 = sphi 0, %s125
      %s140 = sphi 0, %s126
      %s144 = sphi 0, %s144
      %s146 = sphi 0, %s144
      %s147 = sphi 0, %s146
      %s161 = sphi 0, %s147
      %s165 = sphi 0, %s165
      %s167 = sphi 0, %s165
      %s168 = sphi 0, %s167
      %s182 = sphi 0, %s168
      %s186 = sphi 0, %s186
      %s188 = sphi 0, %s186
      %s189 = sphi 0, %s188
      %s203 = sphi 0, %s189
      %s207 = sphi 0, %s207
      %s209 = sphi 0, %s207
      %s210 = sphi 0, %s209
      %s224 = sphi 0, %s210
      %s228 = sphi 0, %s228
      %s230 = sphi 0, %s228
      %s231 = sphi 0, %s230
      %s245 = sphi 0, %s231
      %s249 = sphi 0, %s249
      %s251 = sphi 0, %s249
      %s252 = sphi 0, %s251
      %s266 = sphi 0, %s252
      %s270 = sphi 0, %s270
      %s272 = sphi 0, %s270
      %s273 = sphi 0, %s272
      %s287 = sphi 0, %s273
      %s291 = sphi 0, %s291
      %s293 = sphi 0, %s291
      %s294 = sphi 0, %s293
      %s308 = sphi 0, %s294
      %s312 = sphi 0, %s312
      %s314 = sphi 0, %s312
      %s315 = sphi 0, %s314
      %s329 = sphi 0, %s315
      %s333 = sphi 0, %s333
      %s335 = sphi 0, %s333
      %s336 = sphi 0, %s335
      %s350 = sphi 0, %s336
      %s354 = sphi 0, %s354
      %s356 = sphi 0, %s354
      %s357 = sphi 0, %s356
      %s371 = sphi 0, %s357
      %s375 = sphi 0, %s375
      %s377 = sphi 0, %s375
      %s378 = sphi 0, %s377
      %s392 = sphi 0, %s378
      %s398 = sphi 0, %s400
      %s401 = sphi 0, %s398
      %s402 = sphi 0, %s401
      %s418 = sphi 0, %s402
    $region4: #{tpu_custom_call.1} parent=1 // loop_header_branch
      %29 = sbr.rel (%p27) target = $region8
    $region5: #{tpu_custom_call.1} parent=1 // loop_body
      %s31 = ssub.s32 %s26, 1
      %s32 = ssub.s32 %s26, 2
      %s33 = sadd.s32 %s26, 1
      %s34 = ssub.s32 %s26, %s33
      %p35 = scmp.eq.s32.totalorder %s34, 0
      %s37 = sadd.s32 %s36, 1
      %s38 = scalar_select %p35, %s36, %s37
      %p41 = pneg %p35
      %p42 = scmp.eq.s32.totalorder %s26, 1
      %p43 = por %p41, %p42
      %p44 = scmp.ne.s32.totalorder %s36, %s39
      %p45 = scmp.eq.s32.totalorder %s26, 0
      %p46 = por %p44, %p45
      %p47 = scmp.ne.s32.totalorder %s36, %s39
      %p48 = scmp.eq.s32.totalorder %s31, 1
      %p49 = por %p47, %p48
      %p50 = scmp.ne.s32.totalorder %s39, %s40
      %p51 = scmp.eq.s32.totalorder %s31, 0
      %p52 = por %p50, %p51
      %p53 = scmp.ne.s32.totalorder %s39, %s40
      %p54 = scmp.eq.s32.totalorder %s32, 1
      %p55 = por %p53, %p54
      %p57 = scmp.ne.s32.totalorder %s40, %s56
      %p58 = scmp.eq.s32.totalorder %s32, 0
      %p59 = por %p57, %p58
      %s61 = sadd.s32 %s60, 1
      %p64 = scmp.eq.s32.totalorder %s26, 1
      %p65 = scmp.ne.s32.totalorder %s60, %s62
      %p66 = scmp.eq.s32.totalorder %s26, 0
      %p67 = por %p65, %p66
      %p68 = scmp.ne.s32.totalorder %s60, %s62
      %p69 = scmp.eq.s32.totalorder %s31, 1
      %p70 = por %p68, %p69
      %p71 = scmp.ne.s32.totalorder %s62, %s63
      %p72 = scmp.eq.s32.totalorder %s31, 0
      %p73 = por %p71, %p72
      %p74 = scmp.ne.s32.totalorder %s62, %s63
      %p75 = scmp.eq.s32.totalorder %s32, 1
      %p76 = por %p74, %p75
      %p78 = scmp.ne.s32.totalorder %s63, %s77
      %p79 = scmp.eq.s32.totalorder %s32, 0
      %p80 = por %p78, %p79
      %s82 = sadd.s32 %s81, 1
      %p85 = scmp.eq.s32.totalorder %s26, 1
      %p86 = scmp.ne.s32.totalorder %s81, %s83
      %p87 = scmp.eq.s32.totalorder %s26, 0
      %p88 = por %p86, %p87
      %p89 = scmp.ne.s32.totalorder %s81, %s83
      %p90 = scmp.eq.s32.totalorder %s31, 1
      %p91 = por %p89, %p90
      %p92 = scmp.ne.s32.totalorder %s83, %s84
      %p93 = scmp.eq.s32.totalorder %s31, 0
      %p94 = por %p92, %p93
      %p95 = scmp.ne.s32.totalorder %s83, %s84
      %p96 = scmp.eq.s32.totalorder %s32, 1
      %p97 = por %p95, %p96
      %p99 = scmp.ne.s32.totalorder %s84, %s98
      %p100 = scmp.eq.s32.totalorder %s32, 0
      %p101 = por %p99, %p100
      %s103 = sadd.s32 %s102, 1
      %p106 = scmp.eq.s32.totalorder %s26, 1
      %p107 = scmp.ne.s32.totalorder %s102, %s104
      %p108 = scmp.eq.s32.totalorder %s26, 0
      %p109 = por %p107, %p108
      %p110 = scmp.ne.s32.totalorder %s102, %s104
      %p111 = scmp.eq.s32.totalorder %s31, 1
      %p112 = por %p110, %p111
      %p113 = scmp.ne.s32.totalorder %s104, %s105
      %p114 = scmp.eq.s32.totalorder %s31, 0
      %p115 = por %p113, %p114
      %p116 = scmp.ne.s32.totalorder %s104, %s105
      %p117 = scmp.eq.s32.totalorder %s32, 1
      %p118 = por %p116, %p117
      %p120 = scmp.ne.s32.totalorder %s105, %s119
      %p121 = scmp.eq.s32.totalorder %s32, 0
      %p122 = por %p120, %p121
      %s124 = sadd.s32 %s123, 1
      %p127 = scmp.eq.s32.totalorder %s26, 1
      %p128 = scmp.ne.s32.totalorder %s123, %s125
      %p129 = scmp.eq.s32.totalorder %s26, 0
      %p130 = por %p128, %p129
      %p131 = scmp.ne.s32.totalorder %s123, %s125
      %p132 = scmp.eq.s32.totalorder %s31, 1
      %p133 = por %p131, %p132
      %p134 = scmp.ne.s32.totalorder %s125, %s126
      %p135 = scmp.eq.s32.totalorder %s31, 0
      %p136 = por %p134, %p135
      %p137 = scmp.ne.s32.totalorder %s125, %s126
      %p138 = scmp.eq.s32.totalorder %s32, 1
      %p139 = por %p137, %p138
      %p141 = scmp.ne.s32.totalorder %s126, %s140
      %p142 = scmp.eq.s32.totalorder %s32, 0
      %p143 = por %p141, %p142
      %s145 = sadd.s32 %s144, 1
      %p148 = scmp.eq.s32.totalorder %s26, 1
      %p149 = scmp.ne.s32.totalorder %s144, %s146
      %p150 = scmp.eq.s32.totalorder %s26, 0
      %p151 = por %p149, %p150
      %p152 = scmp.ne.s32.totalorder %s144, %s146
      %p153 = scmp.eq.s32.totalorder %s31, 1
      %p154 = por %p152, %p153
      %p155 = scmp.ne.s32.totalorder %s146, %s147
      %p156 = scmp.eq.s32.totalorder %s31, 0
      %p157 = por %p155, %p156
      %p158 = scmp.ne.s32.totalorder %s146, %s147
      %p159 = scmp.eq.s32.totalorder %s32, 1
      %p160 = por %p158, %p159
      %p162 = scmp.ne.s32.totalorder %s147, %s161
      %p163 = scmp.eq.s32.totalorder %s32, 0
      %p164 = por %p162, %p163
      %s166 = sadd.s32 %s165, 1
      %p169 = scmp.eq.s32.totalorder %s26, 1
      %p170 = scmp.ne.s32.totalorder %s165, %s167
      %p171 = scmp.eq.s32.totalorder %s26, 0
      %p172 = por %p170, %p171
      %p173 = scmp.ne.s32.totalorder %s165, %s167
      %p174 = scmp.eq.s32.totalorder %s31, 1
      %p175 = por %p173, %p174
      %p176 = scmp.ne.s32.totalorder %s167, %s168
      %p177 = scmp.eq.s32.totalorder %s31, 0
      %p178 = por %p176, %p177
      %p179 = scmp.ne.s32.totalorder %s167, %s168
      %p180 = scmp.eq.s32.totalorder %s32, 1
      %p181 = por %p179, %p180
      %p183 = scmp.ne.s32.totalorder %s168, %s182
      %p184 = scmp.eq.s32.totalorder %s32, 0
      %p185 = por %p183, %p184
      %s187 = sadd.s32 %s186, 1
      %p190 = scmp.eq.s32.totalorder %s26, 1
      %p191 = scmp.ne.s32.totalorder %s186, %s188
      %p192 = scmp.eq.s32.totalorder %s26, 0
      %p193 = por %p191, %p192
      %p194 = scmp.ne.s32.totalorder %s186, %s188
      %p195 = scmp.eq.s32.totalorder %s31, 1
      %p196 = por %p194, %p195
      %p197 = scmp.ne.s32.totalorder %s188, %s189
      %p198 = scmp.eq.s32.totalorder %s31, 0
      %p199 = por %p197, %p198
      %p200 = scmp.ne.s32.totalorder %s188, %s189
      %p201 = scmp.eq.s32.totalorder %s32, 1
      %p202 = por %p200, %p201
      %p204 = scmp.ne.s32.totalorder %s189, %s203
      %p205 = scmp.eq.s32.totalorder %s32, 0
      %p206 = por %p204, %p205
      %s208 = sadd.s32 %s207, 1
      %p211 = scmp.eq.s32.totalorder %s26, 1
      %p212 = scmp.ne.s32.totalorder %s207, %s209
      %p213 = scmp.eq.s32.totalorder %s26, 0
      %p214 = por %p212, %p213
      %p215 = scmp.ne.s32.totalorder %s207, %s209
      %p216 = scmp.eq.s32.totalorder %s31, 1
      %p217 = por %p215, %p216
      %p218 = scmp.ne.s32.totalorder %s209, %s210
      %p219 = scmp.eq.s32.totalorder %s31, 0
      %p220 = por %p218, %p219
      %p221 = scmp.ne.s32.totalorder %s209, %s210
      %p222 = scmp.eq.s32.totalorder %s32, 1
      %p223 = por %p221, %p222
      %p225 = scmp.ne.s32.totalorder %s210, %s224
      %p226 = scmp.eq.s32.totalorder %s32, 0
      %p227 = por %p225, %p226
      %s229 = sadd.s32 %s228, 1
      %p232 = scmp.eq.s32.totalorder %s26, 1
      %p233 = scmp.ne.s32.totalorder %s228, %s230
      %p234 = scmp.eq.s32.totalorder %s26, 0
      %p235 = por %p233, %p234
      %p236 = scmp.ne.s32.totalorder %s228, %s230
      %p237 = scmp.eq.s32.totalorder %s31, 1
      %p238 = por %p236, %p237
      %p239 = scmp.ne.s32.totalorder %s230, %s231
      %p240 = scmp.eq.s32.totalorder %s31, 0
      %p241 = por %p239, %p240
      %p242 = scmp.ne.s32.totalorder %s230, %s231
      %p243 = scmp.eq.s32.totalorder %s32, 1
      %p244 = por %p242, %p243
      %p246 = scmp.ne.s32.totalorder %s231, %s245
      %p247 = scmp.eq.s32.totalorder %s32, 0
      %p248 = por %p246, %p247
      %s250 = sadd.s32 %s249, 1
      %p253 = scmp.eq.s32.totalorder %s26, 1
      %p254 = scmp.ne.s32.totalorder %s249, %s251
      %p255 = scmp.eq.s32.totalorder %s26, 0
      %p256 = por %p254, %p255
      %p257 = scmp.ne.s32.totalorder %s249, %s251
      %p258 = scmp.eq.s32.totalorder %s31, 1
      %p259 = por %p257, %p258
      %p260 = scmp.ne.s32.totalorder %s251, %s252
      %p261 = scmp.eq.s32.totalorder %s31, 0
      %p262 = por %p260, %p261
      %p263 = scmp.ne.s32.totalorder %s251, %s252
      %p264 = scmp.eq.s32.totalorder %s32, 1
      %p265 = por %p263, %p264
      %p267 = scmp.ne.s32.totalorder %s252, %s266
      %p268 = scmp.eq.s32.totalorder %s32, 0
      %p269 = por %p267, %p268
      %s271 = sadd.s32 %s270, 1
      %p274 = scmp.eq.s32.totalorder %s26, 1
      %p275 = scmp.ne.s32.totalorder %s270, %s272
      %p276 = scmp.eq.s32.totalorder %s26, 0
      %p277 = por %p275, %p276
      %p278 = scmp.ne.s32.totalorder %s270, %s272
      %p279 = scmp.eq.s32.totalorder %s31, 1
      %p280 = por %p278, %p279
      %p281 = scmp.ne.s32.totalorder %s272, %s273
      %p282 = scmp.eq.s32.totalorder %s31, 0
      %p283 = por %p281, %p282
      %p284 = scmp.ne.s32.totalorder %s272, %s273
      %p285 = scmp.eq.s32.totalorder %s32, 1
      %p286 = por %p284, %p285
      %p288 = scmp.ne.s32.totalorder %s273, %s287
      %p289 = scmp.eq.s32.totalorder %s32, 0
      %p290 = por %p288, %p289
      %s292 = sadd.s32 %s291, 1
      %p295 = scmp.eq.s32.totalorder %s26, 1
      %p296 = scmp.ne.s32.totalorder %s291, %s293
      %p297 = scmp.eq.s32.totalorder %s26, 0
      %p298 = por %p296, %p297
      %p299 = scmp.ne.s32.totalorder %s291, %s293
      %p300 = scmp.eq.s32.totalorder %s31, 1
      %p301 = por %p299, %p300
      %p302 = scmp.ne.s32.totalorder %s293, %s294
      %p303 = scmp.eq.s32.totalorder %s31, 0
      %p304 = por %p302, %p303
      %p305 = scmp.ne.s32.totalorder %s293, %s294
      %p306 = scmp.eq.s32.totalorder %s32, 1
      %p307 = por %p305, %p306
      %p309 = scmp.ne.s32.totalorder %s294, %s308
      %p310 = scmp.eq.s32.totalorder %s32, 0
      %p311 = por %p309, %p310
      %s313 = sadd.s32 %s312, 1
      %p316 = scmp.eq.s32.totalorder %s26, 1
      %p317 = scmp.ne.s32.totalorder %s312, %s314
      %p318 = scmp.eq.s32.totalorder %s26, 0
      %p319 = por %p317, %p318
      %p320 = scmp.ne.s32.totalorder %s312, %s314
      %p321 = scmp.eq.s32.totalorder %s31, 1
      %p322 = por %p320, %p321
      %p323 = scmp.ne.s32.totalorder %s314, %s315
      %p324 = scmp.eq.s32.totalorder %s31, 0
      %p325 = por %p323, %p324
      %p326 = scmp.ne.s32.totalorder %s314, %s315
      %p327 = scmp.eq.s32.totalorder %s32, 1
      %p328 = por %p326, %p327
      %p330 = scmp.ne.s32.totalorder %s315, %s329
      %p331 = scmp.eq.s32.totalorder %s32, 0
      %p332 = por %p330, %p331
      %s334 = sadd.s32 %s333, 1
      %p337 = scmp.eq.s32.totalorder %s26, 1
      %p338 = scmp.ne.s32.totalorder %s333, %s335
      %p339 = scmp.eq.s32.totalorder %s26, 0
      %p340 = por %p338, %p339
      %p341 = scmp.ne.s32.totalorder %s333, %s335
      %p342 = scmp.eq.s32.totalorder %s31, 1
      %p343 = por %p341, %p342
      %p344 = scmp.ne.s32.totalorder %s335, %s336
      %p345 = scmp.eq.s32.totalorder %s31, 0
      %p346 = por %p344, %p345
      %p347 = scmp.ne.s32.totalorder %s335, %s336
      %p348 = scmp.eq.s32.totalorder %s32, 1
      %p349 = por %p347, %p348
      %p351 = scmp.ne.s32.totalorder %s336, %s350
      %p352 = scmp.eq.s32.totalorder %s32, 0
      %p353 = por %p351, %p352
      %s355 = sadd.s32 %s354, 1
      %p358 = scmp.eq.s32.totalorder %s26, 1
      %p359 = scmp.ne.s32.totalorder %s354, %s356
      %p360 = scmp.eq.s32.totalorder %s26, 0
      %p361 = por %p359, %p360
      %p362 = scmp.ne.s32.totalorder %s354, %s356
      %p363 = scmp.eq.s32.totalorder %s31, 1
      %p364 = por %p362, %p363
      %p365 = scmp.ne.s32.totalorder %s356, %s357
      %p366 = scmp.eq.s32.totalorder %s31, 0
      %p367 = por %p365, %p366
      %p368 = scmp.ne.s32.totalorder %s356, %s357
      %p369 = scmp.eq.s32.totalorder %s32, 1
      %p370 = por %p368, %p369
      %p372 = scmp.ne.s32.totalorder %s357, %s371
      %p373 = scmp.eq.s32.totalorder %s32, 0
      %p374 = por %p372, %p373
      %s376 = sadd.s32 %s375, 1
      %p379 = scmp.eq.s32.totalorder %s26, 1
      %p380 = scmp.ne.s32.totalorder %s375, %s377
      %p381 = scmp.eq.s32.totalorder %s26, 0
      %p382 = por %p380, %p381
      %p383 = scmp.ne.s32.totalorder %s375, %s377
      %p384 = scmp.eq.s32.totalorder %s31, 1
      %p385 = por %p383, %p384
      %p386 = scmp.ne.s32.totalorder %s377, %s378
      %p387 = scmp.eq.s32.totalorder %s31, 0
      %p388 = por %p386, %p387
      %p389 = scmp.ne.s32.totalorder %s377, %s378
      %p390 = scmp.eq.s32.totalorder %s32, 1
      %p391 = por %p389, %p390
      %p393 = scmp.ne.s32.totalorder %s378, %s392
      %p394 = scmp.eq.s32.totalorder %s32, 0
      %p395 = por %p393, %p394
      %s396 = ssub.s32 %s26, %s33
      %p397 = scmp.eq.s32.totalorder %s396, 0
      %s399 = sadd.s32 %s398, 1
      %s400 = scalar_select %p397, %s398, %s399
      %p403 = pneg %p397
      %p404 = scmp.eq.s32.totalorder %s26, 1
      %p405 = por %p403, %p404
      %p406 = scmp.ne.s32.totalorder %s398, %s401
      %p407 = scmp.eq.s32.totalorder %s26, 0
      %p408 = por %p406, %p407
      %p409 = scmp.ne.s32.totalorder %s398, %s401
      %p410 = scmp.eq.s32.totalorder %s31, 1
      %p411 = por %p409, %p410
      %p412 = scmp.ne.s32.totalorder %s401, %s402
      %p413 = scmp.eq.s32.totalorder %s31, 0
      %p414 = por %p412, %p413
      %p415 = scmp.ne.s32.totalorder %s401, %s402
      %p416 = scmp.eq.s32.totalorder %s32, 1
      %p417 = por %p415, %p416
      %p419 = scmp.ne.s32.totalorder %s402, %s418
      %p420 = scmp.eq.s32.totalorder %s32, 0
      %p421 = por %p419, %p420
      %p422 = scmp.le.s32.totalorder 1, %s26
      %p423 = scmp.lt.s32.totalorder %s26, 3
      %p424 = pnand %p422, %p423
      %p425 = pneg %p424
      // Predicated region
      $region9: #{tpu_custom_call.1} parent=5 // pred_check
        _
      $region10: #{tpu_custom_call.1} parent=5 // pred_check_branch
        %427 = sbr.rel (%p424) target = $region12
      $region11: #{tpu_custom_call.1} parent=5 // pred_region
        %s428 = ssub.s32 %s26, 1
        // Predicated region
        $region13: #{tpu_custom_call.1} parent=11 // pred_check
          %p429 = pneg %p73
        $region14: #{tpu_custom_call.1} parent=11 // pred_check_branch
          %431 = sbr.rel (%p429) target = $region16
        $region15: #{tpu_custom_call.1} parent=11 // pred_region
          _
        $region16: #{tpu_custom_call.1} parent=11 // pred_fallthru
          _
        // Predicated region
        $region17: #{tpu_custom_call.1} parent=11 // pred_check
          %p432 = pneg %p94
        $region18: #{tpu_custom_call.1} parent=11 // pred_check_branch
          %434 = sbr.rel (%p432) target = $region20
        $region19: #{tpu_custom_call.1} parent=11 // pred_region
          _
        $region20: #{tpu_custom_call.1} parent=11 // pred_fallthru
          _
        // Predicated region
        $region21: #{tpu_custom_call.1} parent=11 // pred_check
          %p435 = pneg %p115
        $region22: #{tpu_custom_call.1} parent=11 // pred_check_branch
          %437 = sbr.rel (%p435) target = $region24
        $region23: #{tpu_custom_call.1} parent=11 // pred_region
          _
        $region24: #{tpu_custom_call.1} parent=11 // pred_fallthru
          _
        // Predicated region
        $region25: #{tpu_custom_call.1} parent=11 // pred_check
          %p438 = pneg %p136
        $region26: #{tpu_custom_call.1} parent=11 // pred_check_branch
          %440 = sbr.rel (%p438) target = $region28
        $region27: #{tpu_custom_call.1} parent=11 // pred_region
          _
        $region28: #{tpu_custom_call.1} parent=11 // pred_fallthru
          _
        // Predicated region
        $region29: #{tpu_custom_call.1} parent=11 // pred_check
          %p441 = pneg %p157
        $region30: #{tpu_custom_call.1} parent=11 // pred_check_branch
          %443 = sbr.rel (%p441) target = $region32
        $region31: #{tpu_custom_call.1} parent=11 // pred_region
          _
        $region32: #{tpu_custom_call.1} parent=11 // pred_fallthru
          _
        // Predicated region
        $region33: #{tpu_custom_call.1} parent=11 // pred_check
          %p444 = pneg %p178
        $region34: #{tpu_custom_call.1} parent=11 // pred_check_branch
          %446 = sbr.rel (%p444) target = $region36
        $region35: #{tpu_custom_call.1} parent=11 // pred_region
          _
        $region36: #{tpu_custom_call.1} parent=11 // pred_fallthru
          _
        // Predicated region
        $region37: #{tpu_custom_call.1} parent=11 // pred_check
          %p447 = pneg %p199
        $region38: #{tpu_custom_call.1} parent=11 // pred_check_branch
          %449 = sbr.rel (%p447) target = $region40
        $region39: #{tpu_custom_call.1} parent=11 // pred_region
          _
        $region40: #{tpu_custom_call.1} parent=11 // pred_fallthru
          _
        // Predicated region
        $region41: #{tpu_custom_call.1} parent=11 // pred_check
          %p450 = pneg %p220
        $region42: #{tpu_custom_call.1} parent=11 // pred_check_branch
          %452 = sbr.rel (%p450) target = $region44
        $region43: #{tpu_custom_call.1} parent=11 // pred_region
          _
        $region44: #{tpu_custom_call.1} parent=11 // pred_fallthru
          _
        // Predicated region
        $region45: #{tpu_custom_call.1} parent=11 // pred_check
          %p453 = pneg %p241
        $region46: #{tpu_custom_call.1} parent=11 // pred_check_branch
          %455 = sbr.rel (%p453) target = $region48
        $region47: #{tpu_custom_call.1} parent=11 // pred_region
          _
        $region48: #{tpu_custom_call.1} parent=11 // pred_fallthru
          _
        // Predicated region
        $region49: #{tpu_custom_call.1} parent=11 // pred_check
          %p456 = pneg %p262
        $region50: #{tpu_custom_call.1} parent=11 // pred_check_branch
          %458 = sbr.rel (%p456) target = $region52
        $region51: #{tpu_custom_call.1} parent=11 // pred_region
          _
        $region52: #{tpu_custom_call.1} parent=11 // pred_fallthru
          _
        // Predicated region
        $region53: #{tpu_custom_call.1} parent=11 // pred_check
          %p459 = pneg %p283
        $region54: #{tpu_custom_call.1} parent=11 // pred_check_branch
          %461 = sbr.rel (%p459) target = $region56
        $region55: #{tpu_custom_call.1} parent=11 // pred_region
          _
        $region56: #{tpu_custom_call.1} parent=11 // pred_fallthru
          _
        // Predicated region
        $region57: #{tpu_custom_call.1} parent=11 // pred_check
          %p462 = pneg %p304
        $region58: #{tpu_custom_call.1} parent=11 // pred_check_branch
          %464 = sbr.rel (%p462) target = $region60
        $region59: #{tpu_custom_call.1} parent=11 // pred_region
          _
        $region60: #{tpu_custom_call.1} parent=11 // pred_fallthru
          _
        // Predicated region
        $region61: #{tpu_custom_call.1} parent=11 // pred_check
          %p465 = pneg %p325
        $region62: #{tpu_custom_call.1} parent=11 // pred_check_branch
          %467 = sbr.rel (%p465) target = $region64
        $region63: #{tpu_custom_call.1} parent=11 // pred_region
          _
        $region64: #{tpu_custom_call.1} parent=11 // pred_fallthru
          _
        // Predicated region
        $region65: #{tpu_custom_call.1} parent=11 // pred_check
          %p468 = pneg %p346
        $region66: #{tpu_custom_call.1} parent=11 // pred_check_branch
          %470 = sbr.rel (%p468) target = $region68
        $region67: #{tpu_custom_call.1} parent=11 // pred_region
          _
        $region68: #{tpu_custom_call.1} parent=11 // pred_fallthru
          _
        // Predicated region
        $region69: #{tpu_custom_call.1} parent=11 // pred_check
          %p471 = pneg %p367
        $region70: #{tpu_custom_call.1} parent=11 // pred_check_branch
          %473 = sbr.rel (%p471) target = $region72
        $region71: #{tpu_custom_call.1} parent=11 // pred_region
          _
        $region72: #{tpu_custom_call.1} parent=11 // pred_fallthru
          _
        // Predicated region
        $region73: #{tpu_custom_call.1} parent=11 // pred_check
          %p474 = pneg %p388
        $region74: #{tpu_custom_call.1} parent=11 // pred_check_branch
          %476 = sbr.rel (%p474) target = $region76
        $region75: #{tpu_custom_call.1} parent=11 // pred_region
          _
        $region76: #{tpu_custom_call.1} parent=11 // pred_fallthru
          _
      $region12: #{tpu_custom_call.1} parent=5 // pred_fallthru
        _
      %p477 = scmp.lt.s32.totalorder %s26, 2
      // Predicated region
      $region77: #{tpu_custom_call.1} parent=5 // pred_check
        %p478 = pneg %p477
      $region78: #{tpu_custom_call.1} parent=5 // pred_check_branch
        %480 = sbr.rel (%p478) target = $region80
      $region79: #{tpu_custom_call.1} parent=5 // pred_region
        // Predicated region
        $region81: #{tpu_custom_call.1} parent=79 // pred_check
          %p481 = pneg %p46
        $region82: #{tpu_custom_call.1} parent=79 // pred_check_branch
          %483 = sbr.rel (%p481) target = $region84
        $region83: #{tpu_custom_call.1} parent=79 // pred_region
          %p484 = scmp.lt.s32.totalorder %s26, 1
          %s485 = scalar_select %p484, %s26, 1
          %s486 = smul.addr %s485, 8
          %s487 = scalar_lea.vmem %s0, %s486
        $region84: #{tpu_custom_call.1} parent=79 // pred_fallthru
          _
      $region80: #{tpu_custom_call.1} parent=5 // pred_fallthru
        _
      %p488 = scmp.le.s32.totalorder 1, %s26
      %p489 = scmp.lt.s32.totalorder %s26, 3
      %p490 = pnand %p488, %p489
      %p491 = pneg %p490
      // Predicated region
      $region85: #{tpu_custom_call.1} parent=5 // pred_check
        _
      $region86: #{tpu_custom_call.1} parent=5 // pred_check_branch
        %493 = sbr.rel (%p490) target = $region88
      $region87: #{tpu_custom_call.1} parent=5 // pred_region
        %s494 = ssub.s32 %s26, 1
        %p495 = scmp.lt.s32.totalorder %s31, 1
        %s496 = scalar_select %p495, %s31, 1
        %s497 = smul.addr %s496, 8
        %s498 = scalar_lea.vmem %s0, %s497
        %p499 = pneg %p52
        %p500 = pneg %p49
        %p501 = pneg %p73
        %p502 = pneg %p70
        %p503 = pneg %p94
        %p504 = pneg %p91
        %p505 = pneg %p115
        %p506 = pneg %p112
        %p507 = pneg %p136
        %p508 = pneg %p133
        %p509 = pneg %p157
        %p510 = pneg %p154
        %p511 = pneg %p178
        %p512 = pneg %p175
        %p513 = pneg %p199
        %p514 = pneg %p196
        %p515 = pneg %p220
        %p516 = pneg %p217
        %p517 = pneg %p241
        %p518 = pneg %p238
        %p519 = pneg %p262
        %p520 = pneg %p259
        %p521 = pneg %p283
        %p522 = pneg %p280
        %p523 = pneg %p304
        %p524 = pneg %p301
        %p525 = pneg %p325
        %p526 = pneg %p322
        %p527 = pneg %p346
        %p528 = pneg %p343
        %p529 = pneg %p367
        %p530 = pneg %p364
        %p531 = pneg %p388
        %p532 = pneg %p385
        %p533 = pneg %p414
        %p534 = pneg %p411
        %s535 = sand.u32 %s401, 1
        %s536 = scalar_lea.sflag [#allocation3], %s535
        %s537 = sand.u32 %s401, 1
        %s538 = smul.addr %s537, 8
        %s539 = scalar_lea.vmem [#allocation2], %s538
        %p540 = scmp.lt.s32.totalorder %s31, 1
        %s541 = scalar_select %p540, %s31, 1
        %s542 = smul.addr %s541, 8
        %s543 = scalar_lea.vmem %s0, %s542
        %v545 = vld [vmem:[%s543] sm:$0xff]
        %v546 = vld [vmem:[%s1] sm:$0x1]
        %v547 = vld [vmem:[%s2] sm:$0x1]
        %vm548 = vcmask 261120
        %v549 = vsel %vm548, %v545, 0.0
        %550 = vadd.xlane.f32.xlu0 %v549
        %v551 = vpop.xlane.xlu0 %550
        %v552 = vrcp.pop 32.0
        %v553 = vmul.f32 %v551, %v552
        %v554 = vsub.f32 %v545, %v553
        %v555 = vmul.f32 %v554, %v554
        %v556 = vsel %vm548, %v555, 0.0
        %557 = vadd.xlane.f32.xlu0 %v556
        %v558 = vpop.xlane.xlu0 %557
        %v559 = vmul.f32 %v558, %v552
        %v560 = vadd.f32 %v559, 1e-05
        %v561 = vrsqrt.pop %v560
        %v562 = vmul.f32 %v554, %v561
        %v564 = vlaneseq
        %v565 = vshrl.u32 %v564, 7
        %v566 = vsub.s32 0, %v565
        %v567 = vrot.slane %v546, %v566
        %v569 = vmul.f32 %v562, %v567
        %v571 = vlaneseq
        %v572 = vshrl.u32 %v571, 7
        %v573 = vsub.s32 0, %v572
        %v574 = vrot.slane %v547, %v573
        %v576 = vadd.f32 %v569, %v574
        %v577 = vpack.c.bf16 %v576, %v576
        %v578 = vld [vmem:[%s3] sm:$0xf]
        %v579 = vld [vmem:[%s3 + $0x4] sm:$0xf]
        %v580 = vld [vmem:[%s3 + $0x8] sm:$0xf]
        %v581 = vld [vmem:[%s3 + $0xc] sm:$0xf]
        %v582 = vld [vmem:[%s3 + $0x10] sm:$0xf]
        %v583 = vld [vmem:[%s3 + $0x14] sm:$0xf]
        %v584 = vld [vmem:[%s3 + $0x18] sm:$0xf]
        %v585 = vld [vmem:[%s3 + $0x1c] sm:$0xf]
        %v586 = vld [vmem:[%s3 + $0x20] sm:$0xf]
        %v587 = vld [vmem:[%s3 + $0x24] sm:$0xf]
        %v588 = vld [vmem:[%s3 + $0x28] sm:$0xf]
        %v589 = vld [vmem:[%s3 + $0x2c] sm:$0xf]
        %v590 = vld [vmem:[%s3 + $0x30] sm:$0xf]
        %v591 = vld [vmem:[%s3 + $0x34] sm:$0xf]
        %v592 = vld [vmem:[%s3 + $0x38] sm:$0xf]
        %v593 = vld [vmem:[%s3 + $0x3c] sm:$0xf]
        %v594 = vld [vmem:[%s4] sm:$0x1]
        %v595 = vld [vmem:[%s4 + $0x1] sm:$0x1]
        %v596 = vld [vmem:[%s4 + $0x2] sm:$0x1]
        %v597 = vld [vmem:[%s4 + $0x3] sm:$0x1]
        %v602 = vlaneseq
        %v603 = vshrl.u32 %v602, 7
        %v604 = vsub.s32 0, %v603
        %v605 = vrot.slane %v594, %v604
        %v606 = vlaneseq
        %v607 = vshrl.u32 %v606, 7
        %v608 = vsub.s32 0, %v607
        %v609 = vrot.slane %v595, %v608
        %v610 = vlaneseq
        %v611 = vshrl.u32 %v610, 7
        %v612 = vsub.s32 0, %v611
        %v613 = vrot.slane %v596, %v612
        %v614 = vlaneseq
        %v615 = vshrl.u32 %v614, 7
        %v616 = vsub.s32 0, %v615
        %v617 = vrot.slane %v597, %v616
        %v626 = vunpack.c.l.b16 %v578
        %v627 = vunpack.c.l.b16 %v579
        %v628 = vunpack.c.l.b16 %v580
        %v629 = vunpack.c.l.b16 %v581
        %v630 = vpack.c.b16 %v627, %v626
        %v631 = vpack.c.b16 %v629, %v628
        %v635 = vsel %vm548, %v577, 0
        %637 = vmatprep.subr.bf16.mxu0 0
        %638 = vmatpush1.bf16.msra.mxu0 0
        %639 = vmatprep.subr.bf16.mxu0 0
        %640 = vmatpush1.bf16.msra.mxu0 0
        %641 = vmatprep.subr.bf16.mxu0 0
        %642 = vmatpush1.bf16.msra.mxu0 0
        %643 = vmatprep.subr.bf16.mxu0 0
        %644 = vmatpush1.bf16.msra.mxu0 0
        %645 = vmatprep.subr.bf16.mxu0 0
        %646 = vmatpush1.bf16.msra.mxu0 0
        %647 = vmatprep.subr.bf16.mxu0 0
        %648 = vmatpush1.bf16.msra.mxu0 0
        %649 = vmatprep.subr.bf16.mxu0 0
        %650 = vmatpush1.bf16.msra.mxu0 %v631
        %651 = vmatprep.subr.bf16.mxu0 0
        %652 = vmatpush1.bf16.msra.mxu0 %v630
        %653 = vmatprep.subr.bf16.mxu0 0
        %654 = vmatpush2.bf16.msra.mxu0 0
        %655 = vmatprep.subr.bf16.mxu0 0
        %656 = vmatpush2.bf16.msra.mxu0 0
        %657 = vmatprep.subr.bf16.mxu0 0
        %658 = vmatpush2.bf16.msra.mxu0 0
        %659 = vmatprep.subr.bf16.mxu0 0
        %660 = vmatpush2.bf16.msra.mxu0 0
        %661 = vmatprep.subr.bf16.mxu0 0
        %662 = vmatpush2.bf16.msra.mxu0 0
        %663 = vmatprep.subr.bf16.mxu0 0
        %664 = vmatpush2.bf16.msra.mxu0 0
        %665 = vmatprep.subr.bf16.mxu0 0
        %666 = vmatpush2.bf16.msra.mxu0 0
        %667 = vmatprep.subr.bf16.mxu0 0
        %668 = vmatpush2.bf16.msra.mxu0 0
        %669 = vmatprep.mubr.bf16.mxu0 0
        %670 = vmatmul.mubr.bf16.gmra.mxu0 %v635
        %v671 = vpop.f32.mrf.mxu0
        %v672 = vadd.f32 %v605, %v671
        %v673 = vpop.f32.mrf.mxu0
        %v674 = vpop.f32.mrf.mxu0
        %v675 = vpop.f32.mrf.mxu0
        %676 = vdwg.mxu0
        %v681 = vunpack.c.l.b16 %v582
        %v682 = vunpack.c.l.b16 %v583
        %v683 = vunpack.c.l.b16 %v584
        %v684 = vunpack.c.l.b16 %v585
        %v685 = vpack.c.b16 %v682, %v681
        %v686 = vpack.c.b16 %v684, %v683
        %689 = vmatprep.subr.bf16.mxu0 0
        %690 = vmatpush1.bf16.msra.mxu0 0
        %691 = vmatprep.subr.bf16.mxu0 0
        %692 = vmatpush1.bf16.msra.mxu0 0
        %693 = vmatprep.subr.bf16.mxu0 0
        %694 = vmatpush1.bf16.msra.mxu0 0
        %695 = vmatprep.subr.bf16.mxu0 0
        %696 = vmatpush1.bf16.msra.mxu0 0
        %697 = vmatprep.subr.bf16.mxu0 0
        %698 = vmatpush1.bf16.msra.mxu0 0
        %699 = vmatprep.subr.bf16.mxu0 0
        %700 = vmatpush1.bf16.msra.mxu0 0
        %701 = vmatprep.subr.bf16.mxu0 0
        %702 = vmatpush1.bf16.msra.mxu0 %v686
        %703 = vmatprep.subr.bf16.mxu0 0
        %704 = vmatpush1.bf16.msra.mxu0 %v685
        %705 = vmatprep.subr.bf16.mxu0 0
        %706 = vmatpush2.bf16.msra.mxu0 0
        %707 = vmatprep.subr.bf16.mxu0 0
        %708 = vmatpush2.bf16.msra.mxu0 0
        %709 = vmatprep.subr.bf16.mxu0 0
        %710 = vmatpush2.bf16.msra.mxu0 0
        %711 = vmatprep.subr.bf16.mxu0 0
        %712 = vmatpush2.bf16.msra.mxu0 0
        %713 = vmatprep.subr.bf16.mxu0 0
        %714 = vmatpush2.bf16.msra.mxu0 0
        %715 = vmatprep.subr.bf16.mxu0 0
        %716 = vmatpush2.bf16.msra.mxu0 0
        %717 = vmatprep.subr.bf16.mxu0 0
        %718 = vmatpush2.bf16.msra.mxu0 0
        %719 = vmatprep.subr.bf16.mxu0 0
        %720 = vmatpush2.bf16.msra.mxu0 0
        %721 = vmatprep.mubr.bf16.mxu0 0
        %722 = vmatmul.mubr.bf16.gmra.mxu0 %v635
        %v723 = vpop.f32.mrf.mxu0
        %v724 = vadd.f32 %v609, %v723
        %v725 = vpop.f32.mrf.mxu0
        %v726 = vpop.f32.mrf.mxu0
        %v727 = vpop.f32.mrf.mxu0
        %728 = vdwg.mxu0
        %v733 = vunpack.c.l.b16 %v586
        %v734 = vunpack.c.l.b16 %v587
        %v735 = vunpack.c.l.b16 %v588
        %v736 = vunpack.c.l.b16 %v589
        %v737 = vpack.c.b16 %v734, %v733
        %v738 = vpack.c.b16 %v736, %v735
        %741 = vmatprep.subr.bf16.mxu0 0
        %742 = vmatpush1.bf16.msra.mxu0 0
        %743 = vmatprep.subr.bf16.mxu0 0
        %744 = vmatpush1.bf16.msra.mxu0 0
        %745 = vmatprep.subr.bf16.mxu0 0
        %746 = vmatpush1.bf16.msra.mxu0 0
        %747 = vmatprep.subr.bf16.mxu0 0
        %748 = vmatpush1.bf16.msra.mxu0 0
        %749 = vmatprep.subr.bf16.mxu0 0
        %750 = vmatpush1.bf16.msra.mxu0 0
        %751 = vmatprep.subr.bf16.mxu0 0
        %752 = vmatpush1.bf16.msra.mxu0 0
        %753 = vmatprep.subr.bf16.mxu0 0
        %754 = vmatpush1.bf16.msra.mxu0 %v738
        %755 = vmatprep.subr.bf16.mxu0 0
        %756 = vmatpush1.bf16.msra.mxu0 %v737
        %757 = vmatprep.subr.bf16.mxu0 0
        %758 = vmatpush2.bf16.msra.mxu0 0
        %759 = vmatprep.subr.bf16.mxu0 0
        %760 = vmatpush2.bf16.msra.mxu0 0
        %761 = vmatprep.subr.bf16.mxu0 0
        %762 = vmatpush2.bf16.msra.mxu0 0
        %763 = vmatprep.subr.bf16.mxu0 0
        %764 = vmatpush2.bf16.msra.mxu0 0
        %765 = vmatprep.subr.bf16.mxu0 0
        %766 = vmatpush2.bf16.msra.mxu0 0
        %767 = vmatprep.subr.bf16.mxu0 0
        %768 = vmatpush2.bf16.msra.mxu0 0
        %769 = vmatprep.subr.bf16.mxu0 0
        %770 = vmatpush2.bf16.msra.mxu0 0
        %771 = vmatprep.subr.bf16.mxu0 0
        %772 = vmatpush2.bf16.msra.mxu0 0
        %773 = vmatprep.mubr.bf16.mxu0 0
        %774 = vmatmul.mubr.bf16.gmra.mxu0 %v635
        %v775 = vpop.f32.mrf.mxu0
        %v776 = vadd.f32 %v613, %v775
        %v777 = vpop.f32.mrf.mxu0
        %v778 = vpop.f32.mrf.mxu0
        %v779 = vpop.f32.mrf.mxu0
        %780 = vdwg.mxu0
        %v785 = vunpack.c.l.b16 %v590
        %v786 = vunpack.c.l.b16 %v591
        %v787 = vunpack.c.l.b16 %v592
        %v788 = vunpack.c.l.b16 %v593
        %v789 = vpack.c.b16 %v786, %v785
        %v790 = vpack.c.b16 %v788, %v787
        %793 = vmatprep.subr.bf16.mxu0 0
        %794 = vmatpush1.bf16.msra.mxu0 0
        %795 = vmatprep.subr.bf16.mxu0 0
        %796 = vmatpush1.bf16.msra.mxu0 0
        %797 = vmatprep.subr.bf16.mxu0 0
        %798 = vmatpush1.bf16.msra.mxu0 0
        %799 = vmatprep.subr.bf16.mxu0 0
        %800 = vmatpush1.bf16.msra.mxu0 0
        %801 = vmatprep.subr.bf16.mxu0 0
        %802 = vmatpush1.bf16.msra.mxu0 0
        %803 = vmatprep.subr.bf16.mxu0 0
        %804 = vmatpush1.bf16.msra.mxu0 0
        %805 = vmatprep.subr.bf16.mxu0 0
        %806 = vmatpush1.bf16.msra.mxu0 %v790
        %807 = vmatprep.subr.bf16.mxu0 0
        %808 = vmatpush1.bf16.msra.mxu0 %v789
        %809 = vmatprep.subr.bf16.mxu0 0
        %810 = vmatpush2.bf16.msra.mxu0 0
        %811 = vmatprep.subr.bf16.mxu0 0
        %812 = vmatpush2.bf16.msra.mxu0 0
        %813 = vmatprep.subr.bf16.mxu0 0
        %814 = vmatpush2.bf16.msra.mxu0 0
        %815 = vmatprep.subr.bf16.mxu0 0
        %816 = vmatpush2.bf16.msra.mxu0 0
        %817 = vmatprep.subr.bf16.mxu0 0
        %818 = vmatpush2.bf16.msra.mxu0 0
        %819 = vmatprep.subr.bf16.mxu0 0
        %820 = vmatpush2.bf16.msra.mxu0 0
        %821 = vmatprep.subr.bf16.mxu0 0
        %822 = vmatpush2.bf16.msra.mxu0 0
        %823 = vmatprep.subr.bf16.mxu0 0
        %824 = vmatpush2.bf16.msra.mxu0 0
        %825 = vmatprep.mubr.bf16.mxu0 0
        %826 = vmatmul.mubr.bf16.gmra.mxu0 %v635
        %v827 = vpop.f32.mrf.mxu0
        %v828 = vadd.f32 %v617, %v827
        %v829 = vpop.f32.mrf.mxu0
        %v830 = vpop.f32.mrf.mxu0
        %v831 = vpop.f32.mrf.mxu0
        %832 = vdwg.mxu0
        %v833 = vld [vmem:[%s5] sm:$0xf]
        %v834 = vld [vmem:[%s5 + $0x4] sm:$0xf]
        %v835 = vld [vmem:[%s5 + $0x8] sm:$0xf]
        %v836 = vld [vmem:[%s5 + $0xc] sm:$0xf]
        %v837 = vld [vmem:[%s5 + $0x10] sm:$0xf]
        %v838 = vld [vmem:[%s5 + $0x14] sm:$0xf]
        %v839 = vld [vmem:[%s5 + $0x18] sm:$0xf]
        %v840 = vld [vmem:[%s5 + $0x1c] sm:$0xf]
        %v841 = vld [vmem:[%s5 + $0x20] sm:$0xf]
        %v842 = vld [vmem:[%s5 + $0x24] sm:$0xf]
        %v843 = vld [vmem:[%s5 + $0x28] sm:$0xf]
        %v844 = vld [vmem:[%s5 + $0x2c] sm:$0xf]
        %v845 = vld [vmem:[%s5 + $0x30] sm:$0xf]
        %v846 = vld [vmem:[%s5 + $0x34] sm:$0xf]
        %v847 = vld [vmem:[%s5 + $0x38] sm:$0xf]
        %v848 = vld [vmem:[%s5 + $0x3c] sm:$0xf]
        %v849 = vld [vmem:[%s6] sm:$0x1]
        %v850 = vld [vmem:[%s6 + $0x1] sm:$0x1]
        %v851 = vld [vmem:[%s6 + $0x2] sm:$0x1]
        %v852 = vld [vmem:[%s6 + $0x3] sm:$0x1]
        %v857 = vlaneseq
        %v858 = vshrl.u32 %v857, 7
        %v859 = vsub.s32 0, %v858
        %v860 = vrot.slane %v849, %v859
        %v861 = vlaneseq
        %v862 = vshrl.u32 %v861, 7
        %v863 = vsub.s32 0, %v862
        %v864 = vrot.slane %v850, %v863
        %v865 = vlaneseq
        %v866 = vshrl.u32 %v865, 7
        %v867 = vsub.s32 0, %v866
        %v868 = vrot.slane %v851, %v867
        %v869 = vlaneseq
        %v870 = vshrl.u32 %v869, 7
        %v871 = vsub.s32 0, %v870
        %v872 = vrot.slane %v852, %v871
        %v881 = vunpack.c.l.b16 %v833
        %v882 = vunpack.c.l.b16 %v834
        %v883 = vunpack.c.l.b16 %v835
        %v884 = vunpack.c.l.b16 %v836
        %v885 = vpack.c.b16 %v882, %v881
        %v886 = vpack.c.b16 %v884, %v883
        %889 = vmatprep.subr.bf16.mxu0 0
        %890 = vmatpush1.bf16.msra.mxu0 0
        %891 = vmatprep.subr.bf16.mxu0 0
        %892 = vmatpush1.bf16.msra.mxu0 0
        %893 = vmatprep.subr.bf16.mxu0 0
        %894 = vmatpush1.bf16.msra.mxu0 0
        %895 = vmatprep.subr.bf16.mxu0 0
        %896 = vmatpush1.bf16.msra.mxu0 0
        %897 = vmatprep.subr.bf16.mxu0 0
        %898 = vmatpush1.bf16.msra.mxu0 0
        %899 = vmatprep.subr.bf16.mxu0 0
        %900 = vmatpush1.bf16.msra.mxu0 0
        %901 = vmatprep.subr.bf16.mxu0 0
        %902 = vmatpush1.bf16.msra.mxu0 %v886
        %903 = vmatprep.subr.bf16.mxu0 0
        %904 = vmatpush1.bf16.msra.mxu0 %v885
        %905 = vmatprep.subr.bf16.mxu0 0
        %906 = vmatpush2.bf16.msra.mxu0 0
        %907 = vmatprep.subr.bf16.mxu0 0
        %908 = vmatpush2.bf16.msra.mxu0 0
        %909 = vmatprep.subr.bf16.mxu0 0
        %910 = vmatpush2.bf16.msra.mxu0 0
        %911 = vmatprep.subr.bf16.mxu0 0
        %912 = vmatpush2.bf16.msra.mxu0 0
        %913 = vmatprep.subr.bf16.mxu0 0
        %914 = vmatpush2.bf16.msra.mxu0 0
        %915 = vmatprep.subr.bf16.mxu0 0
        %916 = vmatpush2.bf16.msra.mxu0 0
        %917 = vmatprep.subr.bf16.mxu0 0
        %918 = vmatpush2.bf16.msra.mxu0 0
        %919 = vmatprep.subr.bf16.mxu0 0
        %920 = vmatpush2.bf16.msra.mxu0 0
        %921 = vmatprep.mubr.bf16.mxu0 0
        %922 = vmatmul.mubr.bf16.gmra.mxu0 %v635
        %v923 = vpop.f32.mrf.mxu0
        %v924 = vadd.f32 %v860, %v923
        %v925 = vpop.f32.mrf.mxu0
        %v926 = vpop.f32.mrf.mxu0
        %v927 = vpop.f32.mrf.mxu0
        %928 = vdwg.mxu0
        %v933 = vunpack.c.l.b16 %v837
        %v934 = vunpack.c.l.b16 %v838
        %v935 = vunpack.c.l.b16 %v839
        %v936 = vunpack.c.l.b16 %v840
        %v937 = vpack.c.b16 %v934, %v933
        %v938 = vpack.c.b16 %v936, %v935
        %941 = vmatprep.subr.bf16.mxu0 0
        %942 = vmatpush1.bf16.msra.mxu0 0
        %943 = vmatprep.subr.bf16.mxu0 0
        %944 = vmatpush1.bf16.msra.mxu0 0
        %945 = vmatprep.subr.bf16.mxu0 0
        %946 = vmatpush1.bf16.msra.mxu0 0
        %947 = vmatprep.subr.bf16.mxu0 0
        %948 = vmatpush1.bf16.msra.mxu0 0
        %949 = vmatprep.subr.bf16.mxu0 0
        %950 = vmatpush1.bf16.msra.mxu0 0
        %951 = vmatprep.subr.bf16.mxu0 0
        %952 = vmatpush1.bf16.msra.mxu0 0
        %953 = vmatprep.subr.bf16.mxu0 0
        %954 = vmatpush1.bf16.msra.mxu0 %v938
        %955 = vmatprep.subr.bf16.mxu0 0
        %956 = vmatpush1.bf16.msra.mxu0 %v937
        %957 = vmatprep.subr.bf16.mxu0 0
        %958 = vmatpush2.bf16.msra.mxu0 0
        %959 = vmatprep.subr.bf16.mxu0 0
        %960 = vmatpush2.bf16.msra.mxu0 0
        %961 = vmatprep.subr.bf16.mxu0 0
        %962 = vmatpush2.bf16.msra.mxu0 0
        %963 = vmatprep.subr.bf16.mxu0 0
        %964 = vmatpush2.bf16.msra.mxu0 0
        %965 = vmatprep.subr.bf16.mxu0 0
        %966 = vmatpush2.bf16.msra.mxu0 0
        %967 = vmatprep.subr.bf16.mxu0 0
        %968 = vmatpush2.bf16.msra.mxu0 0
        %969 = vmatprep.subr.bf16.mxu0 0
        %970 = vmatpush2.bf16.msra.mxu0 0
        %971 = vmatprep.subr.bf16.mxu0 0
        %972 = vmatpush2.bf16.msra.mxu0 0
        %973 = vmatprep.mubr.bf16.mxu0 0
        %974 = vmatmul.mubr.bf16.gmra.mxu0 %v635
        %v975 = vpop.f32.mrf.mxu0
        %v976 = vadd.f32 %v864, %v975
        %v977 = vpop.f32.mrf.mxu0
        %v978 = vpop.f32.mrf.mxu0
        %v979 = vpop.f32.mrf.mxu0
        %980 = vdwg.mxu0
        %v985 = vunpack.c.l.b16 %v841
        %v986 = vunpack.c.l.b16 %v842
        %v987 = vunpack.c.l.b16 %v843
        %v988 = vunpack.c.l.b16 %v844
        %v989 = vpack.c.b16 %v986, %v985
        %v990 = vpack.c.b16 %v988, %v987
        %993 = vmatprep.subr.bf16.mxu0 0
        %994 = vmatpush1.bf16.msra.mxu0 0
        %995 = vmatprep.subr.bf16.mxu0 0
        %996 = vmatpush1.bf16.msra.mxu0 0
        %997 = vmatprep.subr.bf16.mxu0 0
        %998 = vmatpush1.bf16.msra.mxu0 0
        %999 = vmatprep.subr.bf16.mxu0 0
        %1000 = vmatpush1.bf16.msra.mxu0 0
        %1001 = vmatprep.subr.bf16.mxu0 0
        %1002 = vmatpush1.bf16.msra.mxu0 0
        %1003 = vmatprep.subr.bf16.mxu0 0
        %1004 = vmatpush1.bf16.msra.mxu0 0
        %1005 = vmatprep.subr.bf16.mxu0 0
        %1006 = vmatpush1.bf16.msra.mxu0 %v990
        %1007 = vmatprep.subr.bf16.mxu0 0
        %1008 = vmatpush1.bf16.msra.mxu0 %v989
        %1009 = vmatprep.subr.bf16.mxu0 0
        %1010 = vmatpush2.bf16.msra.mxu0 0
        %1011 = vmatprep.subr.bf16.mxu0 0
        %1012 = vmatpush2.bf16.msra.mxu0 0
        %1013 = vmatprep.subr.bf16.mxu0 0
        %1014 = vmatpush2.bf16.msra.mxu0 0
        %1015 = vmatprep.subr.bf16.mxu0 0
        %1016 = vmatpush2.bf16.msra.mxu0 0
        %1017 = vmatprep.subr.bf16.mxu0 0
        %1018 = vmatpush2.bf16.msra.mxu0 0
        %1019 = vmatprep.subr.bf16.mxu0 0
        %1020 = vmatpush2.bf16.msra.mxu0 0
        %1021 = vmatprep.subr.bf16.mxu0 0
        %1022 = vmatpush2.bf16.msra.mxu0 0
        %1023 = vmatprep.subr.bf16.mxu0 0
        %1024 = vmatpush2.bf16.msra.mxu0 0
        %1025 = vmatprep.mubr.bf16.mxu0 0
        %1026 = vmatmul.mubr.bf16.gmra.mxu0 %v635
        %v1027 = vpop.f32.mrf.mxu0
        %v1028 = vadd.f32 %v868, %v1027
        %v1029 = vpop.f32.mrf.mxu0
        %v1030 = vpop.f32.mrf.mxu0
        %v1031 = vpop.f32.mrf.mxu0
        %1032 = vdwg.mxu0
        %v1037 = vunpack.c.l.b16 %v845
        %v1038 = vunpack.c.l.b16 %v846
        %v1039 = vunpack.c.l.b16 %v847
        %v1040 = vunpack.c.l.b16 %v848
        %v1041 = vpack.c.b16 %v1038, %v1037
        %v1042 = vpack.c.b16 %v1040, %v1039
        %1045 = vmatprep.subr.bf16.mxu0 0
        %1046 = vmatpush1.bf16.msra.mxu0 0
        %1047 = vmatprep.subr.bf16.mxu0 0
        %1048 = vmatpush1.bf16.msra.mxu0 0
        %1049 = vmatprep.subr.bf16.mxu0 0
        %1050 = vmatpush1.bf16.msra.mxu0 0
        %1051 = vmatprep.subr.bf16.mxu0 0
        %1052 = vmatpush1.bf16.msra.mxu0 0
        %1053 = vmatprep.subr.bf16.mxu0 0
        %1054 = vmatpush1.bf16.msra.mxu0 0
        %1055 = vmatprep.subr.bf16.mxu0 0
        %1056 = vmatpush1.bf16.msra.mxu0 0
        %1057 = vmatprep.subr.bf16.mxu0 0
        %1058 = vmatpush1.bf16.msra.mxu0 %v1042
        %1059 = vmatprep.subr.bf16.mxu0 0
        %1060 = vmatpush1.bf16.msra.mxu0 %v1041
        %1061 = vmatprep.subr.bf16.mxu0 0
        %1062 = vmatpush2.bf16.msra.mxu0 0
        %1063 = vmatprep.subr.bf16.mxu0 0
        %1064 = vmatpush2.bf16.msra.mxu0 0
        %1065 = vmatprep.subr.bf16.mxu0 0
        %1066 = vmatpush2.bf16.msra.mxu0 0
        %1067 = vmatprep.subr.bf16.mxu0 0
        %1068 = vmatpush2.bf16.msra.mxu0 0
        %1069 = vmatprep.subr.bf16.mxu0 0
        %1070 = vmatpush2.bf16.msra.mxu0 0
        %1071 = vmatprep.subr.bf16.mxu0 0
        %1072 = vmatpush2.bf16.msra.mxu0 0
        %1073 = vmatprep.subr.bf16.mxu0 0
        %1074 = vmatpush2.bf16.msra.mxu0 0
        %1075 = vmatprep.subr.bf16.mxu0 0
        %1076 = vmatpush2.bf16.msra.mxu0 0
        %1077 = vmatprep.mubr.bf16.mxu0 0
        %1078 = vmatmul.mubr.bf16.gmra.mxu0 %v635
        %v1079 = vpop.f32.mrf.mxu0
        %v1080 = vadd.f32 %v872, %v1079
        %v1081 = vpop.f32.mrf.mxu0
        %v1082 = vpop.f32.mrf.mxu0
        %v1083 = vpop.f32.mrf.mxu0
        %1084 = vdwg.mxu0
        %v1085 = vld [vmem:[%s7] sm:$0xf]
        %v1086 = vld [vmem:[%s7 + $0x4] sm:$0xf]
        %v1087 = vld [vmem:[%s7 + $0x8] sm:$0xf]
        %v1088 = vld [vmem:[%s7 + $0xc] sm:$0xf]
        %v1089 = vld [vmem:[%s7 + $0x10] sm:$0xf]
        %v1090 = vld [vmem:[%s7 + $0x14] sm:$0xf]
        %v1091 = vld [vmem:[%s7 + $0x18] sm:$0xf]
        %v1092 = vld [vmem:[%s7 + $0x1c] sm:$0xf]
        %v1093 = vld [vmem:[%s7 + $0x20] sm:$0xf]
        %v1094 = vld [vmem:[%s7 + $0x24] sm:$0xf]
        %v1095 = vld [vmem:[%s7 + $0x28] sm:$0xf]
        %v1096 = vld [vmem:[%s7 + $0x2c] sm:$0xf]
        %v1097 = vld [vmem:[%s7 + $0x30] sm:$0xf]
        %v1098 = vld [vmem:[%s7 + $0x34] sm:$0xf]
        %v1099 = vld [vmem:[%s7 + $0x38] sm:$0xf]
        %v1100 = vld [vmem:[%s7 + $0x3c] sm:$0xf]
        %v1101 = vld [vmem:[%s8] sm:$0x1]
        %v1102 = vld [vmem:[%s8 + $0x1] sm:$0x1]
        %v1103 = vld [vmem:[%s8 + $0x2] sm:$0x1]
        %v1104 = vld [vmem:[%s8 + $0x3] sm:$0x1]
        %v1109 = vlaneseq
        %v1110 = vshrl.u32 %v1109, 7
        %v1111 = vsub.s32 0, %v1110
        %v1112 = vrot.slane %v1101, %v1111
        %v1113 = vlaneseq
        %v1114 = vshrl.u32 %v1113, 7
        %v1115 = vsub.s32 0, %v1114
        %v1116 = vrot.slane %v1102, %v1115
        %v1117 = vlaneseq
        %v1118 = vshrl.u32 %v1117, 7
        %v1119 = vsub.s32 0, %v1118
        %v1120 = vrot.slane %v1103, %v1119
        %v1121 = vlaneseq
        %v1122 = vshrl.u32 %v1121, 7
        %v1123 = vsub.s32 0, %v1122
        %v1124 = vrot.slane %v1104, %v1123
        %v1133 = vunpack.c.l.b16 %v1085
        %v1134 = vunpack.c.l.b16 %v1086
        %v1135 = vunpack.c.l.b16 %v1087
        %v1136 = vunpack.c.l.b16 %v1088
        %v1137 = vpack.c.b16 %v1134, %v1133
        %v1138 = vpack.c.b16 %v1136, %v1135
        %1141 = vmatprep.subr.bf16.mxu0 0
        %1142 = vmatpush1.bf16.msra.mxu0 0
        %1143 = vmatprep.subr.bf16.mxu0 0
        %1144 = vmatpush1.bf16.msra.mxu0 0
        %1145 = vmatprep.subr.bf16.mxu0 0
        %1146 = vmatpush1.bf16.msra.mxu0 0
        %1147 = vmatprep.subr.bf16.mxu0 0
        %1148 = vmatpush1.bf16.msra.mxu0 0
        %1149 = vmatprep.subr.bf16.mxu0 0
        %1150 = vmatpush1.bf16.msra.mxu0 0
        %1151 = vmatprep.subr.bf16.mxu0 0
        %1152 = vmatpush1.bf16.msra.mxu0 0
        %1153 = vmatprep.subr.bf16.mxu0 0
        %1154 = vmatpush1.bf16.msra.mxu0 %v1138
        %1155 = vmatprep.subr.bf16.mxu0 0
        %1156 = vmatpush1.bf16.msra.mxu0 %v1137
        %1157 = vmatprep.subr.bf16.mxu0 0
        %1158 = vmatpush2.bf16.msra.mxu0 0
        %1159 = vmatprep.subr.bf16.mxu0 0
        %1160 = vmatpush2.bf16.msra.mxu0 0
        %1161 = vmatprep.subr.bf16.mxu0 0
        %1162 = vmatpush2.bf16.msra.mxu0 0
        %1163 = vmatprep.subr.bf16.mxu0 0
        %1164 = vmatpush2.bf16.msra.mxu0 0
        %1165 = vmatprep.subr.bf16.mxu0 0
        %1166 = vmatpush2.bf16.msra.mxu0 0
        %1167 = vmatprep.subr.bf16.mxu0 0
        %1168 = vmatpush2.bf16.msra.mxu0 0
        %1169 = vmatprep.subr.bf16.mxu0 0
        %1170 = vmatpush2.bf16.msra.mxu0 0
        %1171 = vmatprep.subr.bf16.mxu0 0
        %1172 = vmatpush2.bf16.msra.mxu0 0
        %1173 = vmatprep.mubr.bf16.mxu0 0
        %1174 = vmatmul.mubr.bf16.gmra.mxu0 %v635
        %v1175 = vpop.f32.mrf.mxu0
        %v1176 = vadd.f32 %v1112, %v1175
        %v1177 = vpop.f32.mrf.mxu0
        %v1178 = vpop.f32.mrf.mxu0
        %v1179 = vpop.f32.mrf.mxu0
        %1180 = vdwg.mxu0
        %v1185 = vunpack.c.l.b16 %v1089
        %v1186 = vunpack.c.l.b16 %v1090
        %v1187 = vunpack.c.l.b16 %v1091
        %v1188 = vunpack.c.l.b16 %v1092
        %v1189 = vpack.c.b16 %v1186, %v1185
        %v1190 = vpack.c.b16 %v1188, %v1187
        %1193 = vmatprep.subr.bf16.mxu0 0
        %1194 = vmatpush1.bf16.msra.mxu0 0
        %1195 = vmatprep.subr.bf16.mxu0 0
        %1196 = vmatpush1.bf16.msra.mxu0 0
        %1197 = vmatprep.subr.bf16.mxu0 0
        %1198 = vmatpush1.bf16.msra.mxu0 0
        %1199 = vmatprep.subr.bf16.mxu0 0
        %1200 = vmatpush1.bf16.msra.mxu0 0
        %1201 = vmatprep.subr.bf16.mxu0 0
        %1202 = vmatpush1.bf16.msra.mxu0 0
        %1203 = vmatprep.subr.bf16.mxu0 0
        %1204 = vmatpush1.bf16.msra.mxu0 0
        %1205 = vmatprep.subr.bf16.mxu0 0
        %1206 = vmatpush1.bf16.msra.mxu0 %v1190
        %1207 = vmatprep.subr.bf16.mxu0 0
        %1208 = vmatpush1.bf16.msra.mxu0 %v1189
        %1209 = vmatprep.subr.bf16.mxu0 0
        %1210 = vmatpush2.bf16.msra.mxu0 0
        %1211 = vmatprep.subr.bf16.mxu0 0
        %1212 = vmatpush2.bf16.msra.mxu0 0
        %1213 = vmatprep.subr.bf16.mxu0 0
        %1214 = vmatpush2.bf16.msra.mxu0 0
        %1215 = vmatprep.subr.bf16.mxu0 0
        %1216 = vmatpush2.bf16.msra.mxu0 0
        %1217 = vmatprep.subr.bf16.mxu0 0
        %1218 = vmatpush2.bf16.msra.mxu0 0
        %1219 = vmatprep.subr.bf16.mxu0 0
        %1220 = vmatpush2.bf16.msra.mxu0 0
        %1221 = vmatprep.subr.bf16.mxu0 0
        %1222 = vmatpush2.bf16.msra.mxu0 0
        %1223 = vmatprep.subr.bf16.mxu0 0
        %1224 = vmatpush2.bf16.msra.mxu0 0
        %1225 = vmatprep.mubr.bf16.mxu0 0
        %1226 = vmatmul.mubr.bf16.gmra.mxu0 %v635
        %v1227 = vpop.f32.mrf.mxu0
        %v1228 = vadd.f32 %v1116, %v1227
        %v1229 = vpop.f32.mrf.mxu0
        %v1230 = vpop.f32.mrf.mxu0
        %v1231 = vpop.f32.mrf.mxu0
        %1232 = vdwg.mxu0
        %v1237 = vunpack.c.l.b16 %v1093
        %v1238 = vunpack.c.l.b16 %v1094
        %v1239 = vunpack.c.l.b16 %v1095
        %v1240 = vunpack.c.l.b16 %v1096
        %v1241 = vpack.c.b16 %v1238, %v1237
        %v1242 = vpack.c.b16 %v1240, %v1239
        %1245 = vmatprep.subr.bf16.mxu0 0
        %1246 = vmatpush1.bf16.msra.mxu0 0
        %1247 = vmatprep.subr.bf16.mxu0 0
        %1248 = vmatpush1.bf16.msra.mxu0 0
        %1249 = vmatprep.subr.bf16.mxu0 0
        %1250 = vmatpush1.bf16.msra.mxu0 0
        %1251 = vmatprep.subr.bf16.mxu0 0
        %1252 = vmatpush1.bf16.msra.mxu0 0
        %1253 = vmatprep.subr.bf16.mxu0 0
        %1254 = vmatpush1.bf16.msra.mxu0 0
        %1255 = vmatprep.subr.bf16.mxu0 0
        %1256 = vmatpush1.bf16.msra.mxu0 0
        %1257 = vmatprep.subr.bf16.mxu0 0
        %1258 = vmatpush1.bf16.msra.mxu0 %v1242
        %1259 = vmatprep.subr.bf16.mxu0 0
        %1260 = vmatpush1.bf16.msra.mxu0 %v1241
        %1261 = vmatprep.subr.bf16.mxu0 0
        %1262 = vmatpush2.bf16.msra.mxu0 0
        %1263 = vmatprep.subr.bf16.mxu0 0
        %1264 = vmatpush2.bf16.msra.mxu0 0
        %1265 = vmatprep.subr.bf16.mxu0 0
        %1266 = vmatpush2.bf16.msra.mxu0 0
        %1267 = vmatprep.subr.bf16.mxu0 0
        %1268 = vmatpush2.bf16.msra.mxu0 0
        %1269 = vmatprep.subr.bf16.mxu0 0
        %1270 = vmatpush2.bf16.msra.mxu0 0
        %1271 = vmatprep.subr.bf16.mxu0 0
        %1272 = vmatpush2.bf16.msra.mxu0 0
        %1273 = vmatprep.subr.bf16.mxu0 0
        %1274 = vmatpush2.bf16.msra.mxu0 0
        %1275 = vmatprep.subr.bf16.mxu0 0
        %1276 = vmatpush2.bf16.msra.mxu0 0
        %1277 = vmatprep.mubr.bf16.mxu0 0
        %1278 = vmatmul.mubr.bf16.gmra.mxu0 %v635
        %v1279 = vpop.f32.mrf.mxu0
        %v1280 = vadd.f32 %v1120, %v1279
        %v1281 = vpop.f32.mrf.mxu0
        %v1282 = vpop.f32.mrf.mxu0
        %v1283 = vpop.f32.mrf.mxu0
        %1284 = vdwg.mxu0
        %v1289 = vunpack.c.l.b16 %v1097
        %v1290 = vunpack.c.l.b16 %v1098
        %v1291 = vunpack.c.l.b16 %v1099
        %v1292 = vunpack.c.l.b16 %v1100
        %v1293 = vpack.c.b16 %v1290, %v1289
        %v1294 = vpack.c.b16 %v1292, %v1291
        %1297 = vmatprep.subr.bf16.mxu0 0
        %1298 = vmatpush1.bf16.msra.mxu0 0
        %1299 = vmatprep.subr.bf16.mxu0 0
        %1300 = vmatpush1.bf16.msra.mxu0 0
        %1301 = vmatprep.subr.bf16.mxu0 0
        %1302 = vmatpush1.bf16.msra.mxu0 0
        %1303 = vmatprep.subr.bf16.mxu0 0
        %1304 = vmatpush1.bf16.msra.mxu0 0
        %1305 = vmatprep.subr.bf16.mxu0 0
        %1306 = vmatpush1.bf16.msra.mxu0 0
        %1307 = vmatprep.subr.bf16.mxu0 0
        %1308 = vmatpush1.bf16.msra.mxu0 0
        %1309 = vmatprep.subr.bf16.mxu0 0
        %1310 = vmatpush1.bf16.msra.mxu0 %v1294
        %1311 = vmatprep.subr.bf16.mxu0 0
        %1312 = vmatpush1.bf16.msra.mxu0 %v1293
        %1313 = vmatprep.subr.bf16.mxu0 0
        %1314 = vmatpush2.bf16.msra.mxu0 0
        %1315 = vmatprep.subr.bf16.mxu0 0
        %1316 = vmatpush2.bf16.msra.mxu0 0
        %1317 = vmatprep.subr.bf16.mxu0 0
        %1318 = vmatpush2.bf16.msra.mxu0 0
        %1319 = vmatprep.subr.bf16.mxu0 0
        %1320 = vmatpush2.bf16.msra.mxu0 0
        %1321 = vmatprep.subr.bf16.mxu0 0
        %1322 = vmatpush2.bf16.msra.mxu0 0
        %1323 = vmatprep.subr.bf16.mxu0 0
        %1324 = vmatpush2.bf16.msra.mxu0 0
        %1325 = vmatprep.subr.bf16.mxu0 0
        %1326 = vmatpush2.bf16.msra.mxu0 0
        %1327 = vmatprep.subr.bf16.mxu0 0
        %1328 = vmatpush2.bf16.msra.mxu0 0
        %1329 = vmatprep.mubr.bf16.mxu0 0
        %1330 = vmatmul.mubr.bf16.gmra.mxu0 %v635
        %v1331 = vpop.f32.mrf.mxu0
        %v1332 = vadd.f32 %v1124, %v1331
        %v1333 = vpop.f32.mrf.mxu0
        %v1334 = vpop.f32.mrf.mxu0
        %v1335 = vpop.f32.mrf.mxu0
        %1336 = vdwg.mxu0
        %v1337 = vpack.c.bf16 %v672, %v672
        %v1338 = vpack.c.bf16 %v724, %v724
        %v1339 = vpack.c.bf16 %v776, %v776
        %v1340 = vpack.c.bf16 %v828, %v828
        %v1341 = vpack.c.bf16 %v924, %v924
        %v1342 = vpack.c.bf16 %v976, %v976
        %v1343 = vpack.c.bf16 %v1028, %v1028
        %v1344 = vpack.c.bf16 %v1080, %v1080
        %v1345 = vpack.c.bf16 %v1176, %v1176
        %v1346 = vpack.c.bf16 %v1228, %v1228
        %v1347 = vpack.c.bf16 %v1280, %v1280
        %v1348 = vpack.c.bf16 %v1332, %v1332
        %vm1349 = vcmask 64512
        %v1351 = vsel %vm1349, %v1337, 0
        %v1354 = vsel %vm1349, %v1341, 0
        %1356 = vmatprep.subr.bf16.mxu0 0
        %1357 = vmatpush1.bf16.xpose.msra.mxu0 0
        %1358 = vmatprep.subr.bf16.mxu0 0
        %1359 = vmatpush1.bf16.xpose.msra.mxu0 0
        %1360 = vmatprep.subr.bf16.mxu0 0
        %1361 = vmatpush1.bf16.xpose.msra.mxu0 0
        %1362 = vmatprep.subr.bf16.mxu0 0
        %1363 = vmatpush1.bf16.xpose.msra.mxu0 0
        %1364 = vmatprep.subr.bf16.mxu0 0
        %1365 = vmatpush1.bf16.xpose.msra.mxu0 0
        %1366 = vmatprep.subr.bf16.mxu0 0
        %1367 = vmatpush1.bf16.xpose.msra.mxu0 0
        %1368 = vmatprep.subr.bf16.mxu0 0
        %1369 = vmatpush1.bf16.xpose.msra.mxu0 0
        %1370 = vmatprep.subr.bf16.mxu0 0
        %1371 = vmatpush1.bf16.xpose.msra.mxu0 %v1354
        %1372 = vmatprep.subr.bf16.mxu0 0
        %1373 = vmatpush2.bf16.xpose.msra.mxu0 0
        %1374 = vmatprep.subr.bf16.mxu0 0
        %1375 = vmatpush2.bf16.xpose.msra.mxu0 0
        %1376 = vmatprep.subr.bf16.mxu0 0
        %1377 = vmatpush2.bf16.xpose.msra.mxu0 0
        %1378 = vmatprep.subr.bf16.mxu0 0
        %1379 = vmatpush2.bf16.xpose.msra.mxu0 0
        %1380 = vmatprep.subr.bf16.mxu0 0
        %1381 = vmatpush2.bf16.xpose.msra.mxu0 0
        %1382 = vmatprep.subr.bf16.mxu0 0
        %1383 = vmatpush2.bf16.xpose.msra.mxu0 0
        %1384 = vmatprep.subr.bf16.mxu0 0
        %1385 = vmatpush2.bf16.xpose.msra.mxu0 0
        %1386 = vmatprep.subr.bf16.mxu0 0
        %1387 = vmatpush2.bf16.xpose.msra.mxu0 0
        %1388 = vmatprep.mubr.bf16.mxu0 0
        %1389 = vmatmul.mubr.bf16.gmra.mxu0 %v1351
        %v1390 = vpop.f32.mrf.mxu0
        %v1391 = vadd.f32 0.0, %v1390
        %v1392 = vpop.f32.mrf.mxu0
        %v1393 = vpop.f32.mrf.mxu0
        %v1394 = vpop.f32.mrf.mxu0
        %1395 = vdwg.mxu0
        %v1397 = vsel %vm1349, %v1338, 0
        %v1400 = vsel %vm1349, %v1342, 0
        %1402 = vmatprep.subr.bf16.mxu0 0
        %1403 = vmatpush1.bf16.xpose.msra.mxu0 0
        %1404 = vmatprep.subr.bf16.mxu0 0
        %1405 = vmatpush1.bf16.xpose.msra.mxu0 0
        %1406 = vmatprep.subr.bf16.mxu0 0
        %1407 = vmatpush1.bf16.xpose.msra.mxu0 0
        %1408 = vmatprep.subr.bf16.mxu0 0
        %1409 = vmatpush1.bf16.xpose.msra.mxu0 0
        %1410 = vmatprep.subr.bf16.mxu0 0
        %1411 = vmatpush1.bf16.xpose.msra.mxu0 0
        %1412 = vmatprep.subr.bf16.mxu0 0
        %1413 = vmatpush1.bf16.xpose.msra.mxu0 0
        %1414 = vmatprep.subr.bf16.mxu0 0
        %1415 = vmatpush1.bf16.xpose.msra.mxu0 0
        %1416 = vmatprep.subr.bf16.mxu0 0
        %1417 = vmatpush1.bf16.xpose.msra.mxu0 %v1400
        %1418 = vmatprep.subr.bf16.mxu0 0
        %1419 = vmatpush2.bf16.xpose.msra.mxu0 0
        %1420 = vmatprep.subr.bf16.mxu0 0
        %1421 = vmatpush2.bf16.xpose.msra.mxu0 0
        %1422 = vmatprep.subr.bf16.mxu0 0
        %1423 = vmatpush2.bf16.xpose.msra.mxu0 0
        %1424 = vmatprep.subr.bf16.mxu0 0
        %1425 = vmatpush2.bf16.xpose.msra.mxu0 0
        %1426 = vmatprep.subr.bf16.mxu0 0
        %1427 = vmatpush2.bf16.xpose.msra.mxu0 0
        %1428 = vmatprep.subr.bf16.mxu0 0
        %1429 = vmatpush2.bf16.xpose.msra.mxu0 0
        %1430 = vmatprep.subr.bf16.mxu0 0
        %1431 = vmatpush2.bf16.xpose.msra.mxu0 0
        %1432 = vmatprep.subr.bf16.mxu0 0
        %1433 = vmatpush2.bf16.xpose.msra.mxu0 0
        %1434 = vmatprep.mubr.bf16.mxu0 0
        %1435 = vmatmul.mubr.bf16.gmra.mxu0 %v1397
        %v1436 = vpop.f32.mrf.mxu0
        %v1437 = vadd.f32 0.0, %v1436
        %v1438 = vpop.f32.mrf.mxu0
        %v1439 = vpop.f32.mrf.mxu0
        %v1440 = vpop.f32.mrf.mxu0
        %1441 = vdwg.mxu0
        %v1443 = vsel %vm1349, %v1339, 0
        %v1446 = vsel %vm1349, %v1343, 0
        %1448 = vmatprep.subr.bf16.mxu0 0
        %1449 = vmatpush1.bf16.xpose.msra.mxu0 0
        %1450 = vmatprep.subr.bf16.mxu0 0
        %1451 = vmatpush1.bf16.xpose.msra.mxu0 0
        %1452 = vmatprep.subr.bf16.mxu0 0
        %1453 = vmatpush1.bf16.xpose.msra.mxu0 0
        %1454 = vmatprep.subr.bf16.mxu0 0
        %1455 = vmatpush1.bf16.xpose.msra.mxu0 0
        %1456 = vmatprep.subr.bf16.mxu0 0
        %1457 = vmatpush1.bf16.xpose.msra.mxu0 0
        %1458 = vmatprep.subr.bf16.mxu0 0
        %1459 = vmatpush1.bf16.xpose.msra.mxu0 0
        %1460 = vmatprep.subr.bf16.mxu0 0
        %1461 = vmatpush1.bf16.xpose.msra.mxu0 0
        %1462 = vmatprep.subr.bf16.mxu0 0
        %1463 = vmatpush1.bf16.xpose.msra.mxu0 %v1446
        %1464 = vmatprep.subr.bf16.mxu0 0
        %1465 = vmatpush2.bf16.xpose.msra.mxu0 0
        %1466 = vmatprep.subr.bf16.mxu0 0
        %1467 = vmatpush2.bf16.xpose.msra.mxu0 0
        %1468 = vmatprep.subr.bf16.mxu0 0
        %1469 = vmatpush2.bf16.xpose.msra.mxu0 0
        %1470 = vmatprep.subr.bf16.mxu0 0
        %1471 = vmatpush2.bf16.xpose.msra.mxu0 0
        %1472 = vmatprep.subr.bf16.mxu0 0
        %1473 = vmatpush2.bf16.xpose.msra.mxu0 0
        %1474 = vmatprep.subr.bf16.mxu0 0
        %1475 = vmatpush2.bf16.xpose.msra.mxu0 0
        %1476 = vmatprep.subr.bf16.mxu0 0
        %1477 = vmatpush2.bf16.xpose.msra.mxu0 0
        %1478 = vmatprep.subr.bf16.mxu0 0
        %1479 = vmatpush2.bf16.xpose.msra.mxu0 0
        %1480 = vmatprep.mubr.bf16.mxu0 0
        %1481 = vmatmul.mubr.bf16.gmra.mxu0 %v1443
        %v1482 = vpop.f32.mrf.mxu0
        %v1483 = vadd.f32 0.0, %v1482
        %v1484 = vpop.f32.mrf.mxu0
        %v1485 = vpop.f32.mrf.mxu0
        %v1486 = vpop.f32.mrf.mxu0
        %1487 = vdwg.mxu0
        %v1489 = vsel %vm1349, %v1340, 0
        %v1492 = vsel %vm1349, %v1344, 0
        %1494 = vmatprep.subr.bf16.mxu0 0
        %1495 = vmatpush1.bf16.xpose.msra.mxu0 0
        %1496 = vmatprep.subr.bf16.mxu0 0
        %1497 = vmatpush1.bf16.xpose.msra.mxu0 0
        %1498 = vmatprep.subr.bf16.mxu0 0
        %1499 = vmatpush1.bf16.xpose.msra.mxu0 0
        %1500 = vmatprep.subr.bf16.mxu0 0
        %1501 = vmatpush1.bf16.xpose.msra.mxu0 0
        %1502 = vmatprep.subr.bf16.mxu0 0
        %1503 = vmatpush1.bf16.xpose.msra.mxu0 0
        %1504 = vmatprep.subr.bf16.mxu0 0
        %1505 = vmatpush1.bf16.xpose.msra.mxu0 0
        %1506 = vmatprep.subr.bf16.mxu0 0
        %1507 = vmatpush1.bf16.xpose.msra.mxu0 0
        %1508 = vmatprep.subr.bf16.mxu0 0
        %1509 = vmatpush1.bf16.xpose.msra.mxu0 %v1492
        %1510 = vmatprep.subr.bf16.mxu0 0
        %1511 = vmatpush2.bf16.xpose.msra.mxu0 0
        %1512 = vmatprep.subr.bf16.mxu0 0
        %1513 = vmatpush2.bf16.xpose.msra.mxu0 0
        %1514 = vmatprep.subr.bf16.mxu0 0
        %1515 = vmatpush2.bf16.xpose.msra.mxu0 0
        %1516 = vmatprep.subr.bf16.mxu0 0
        %1517 = vmatpush2.bf16.xpose.msra.mxu0 0
        %1518 = vmatprep.subr.bf16.mxu0 0
        %1519 = vmatpush2.bf16.xpose.msra.mxu0 0
        %1520 = vmatprep.subr.bf16.mxu0 0
        %1521 = vmatpush2.bf16.xpose.msra.mxu0 0
        %1522 = vmatprep.subr.bf16.mxu0 0
        %1523 = vmatpush2.bf16.xpose.msra.mxu0 0
        %1524 = vmatprep.subr.bf16.mxu0 0
        %1525 = vmatpush2.bf16.xpose.msra.mxu0 0
        %1526 = vmatprep.mubr.bf16.mxu0 0
        %1527 = vmatmul.mubr.bf16.gmra.mxu0 %v1489
        %v1528 = vpop.f32.mrf.mxu0
        %v1529 = vadd.f32 0.0, %v1528
        %v1530 = vpop.f32.mrf.mxu0
        %v1531 = vpop.f32.mrf.mxu0
        %v1532 = vpop.f32.mrf.mxu0
        %1533 = vdwg.mxu0
        %v1534 = vlaneseq
        %v1535 = vshrl.u32 %v1534, 7
        %v1536 = vlaneseq
        %v1537 = vand.u32 %v1536, 127
        %vm1538 = vcmp.le.s32.totalorder %v1537, %v1535
        %v1539 = vsel %vm1538, 1, 0
        %vm1540 = vcmp.eq.s32.totalorder %v1539, 1
        %v1541 = vsel %vm1540, %v1391, -1e+30
        %v1542 = vsel %vm1540, %v1437, -1e+30
        %v1543 = vsel %vm1540, %v1483, -1e+30
        %v1544 = vsel %vm1540, %v1529, -1e+30
        %v1545 = vsel %vm1349, %v1541, -inf
        %1546 = vmax.xlane.f32.xlu0 %v1545
        %v1547 = vpop.xlane.xlu0 %1546
        %v1548 = vsel %vm1349, %v1542, -inf
        %1549 = vmax.xlane.f32.xlu0 %v1548
        %v1550 = vpop.xlane.xlu0 %1549
        %v1551 = vsel %vm1349, %v1543, -inf
        %1552 = vmax.xlane.f32.xlu0 %v1551
        %v1553 = vpop.xlane.xlu0 %1552
        %v1554 = vsel %vm1349, %v1544, -inf
        %1555 = vmax.xlane.f32.xlu0 %v1554
        %v1556 = vpop.xlane.xlu0 %1555
        %v1557 = vsub.f32 %v1541, %v1547
        %v1558 = vsub.f32 %v1542, %v1550
        %v1559 = vsub.f32 %v1543, %v1553
        %v1560 = vsub.f32 %v1544, %v1556
        %v1561 = vmul.f32 %v1557, 1.442695
        %v1562 = vpow.pop %v1561
        %v1563 = vmul.f32 %v1558, 1.442695
        %v1564 = vpow.pop %v1563
        %v1565 = vmul.f32 %v1559, 1.442695
        %v1566 = vpow.pop %v1565
        %v1567 = vmul.f32 %v1560, 1.442695
        %v1568 = vpow.pop %v1567
        %v1569 = vsel %vm1349, %v1562, 0.0
        %1570 = vadd.xlane.f32.xlu0 %v1569
        %v1571 = vpop.xlane.xlu0 %1570
        %v1572 = vsel %vm1349, %v1564, 0.0
        %1573 = vadd.xlane.f32.xlu0 %v1572
        %v1574 = vpop.xlane.xlu0 %1573
        %v1575 = vsel %vm1349, %v1566, 0.0
        %1576 = vadd.xlane.f32.xlu0 %v1575
        %v1577 = vpop.xlane.xlu0 %1576
        %v1578 = vsel %vm1349, %v1568, 0.0
        %1579 = vadd.xlane.f32.xlu0 %v1578
        %v1580 = vpop.xlane.xlu0 %1579
        %v1581 = vrcp.pop %v1571
        %v1582 = vrcp.pop %v1574
        %v1583 = vrcp.pop %v1577
        %v1584 = vrcp.pop %v1580
        %v1585 = vmul.f32 %v1562, %v1581
        %v1586 = vmul.f32 %v1564, %v1582
        %v1587 = vmul.f32 %v1566, %v1583
        %v1588 = vmul.f32 %v1568, %v1584
        %v1589 = vpack.c.bf16 %v1585, %v1585
        %v1590 = vpack.c.bf16 %v1586, %v1586
        %v1591 = vpack.c.bf16 %v1587, %v1587
        %v1592 = vpack.c.bf16 %v1588, %v1588
        %v1594 = vsel %vm1349, %v1589, 0
        %vm1596 = vcmask 1043456
        %v1598 = vsel %vm1596, %v1345, 0
        %1600 = vmatprep.subr.bf16.mxu0 0
        %1601 = vmatpush1.bf16.msra.mxu0 0
        %1602 = vmatprep.subr.bf16.mxu0 0
        %1603 = vmatpush1.bf16.msra.mxu0 0
        %1604 = vmatprep.subr.bf16.mxu0 0
        %1605 = vmatpush1.bf16.msra.mxu0 0
        %1606 = vmatprep.subr.bf16.mxu0 0
        %1607 = vmatpush1.bf16.msra.mxu0 0
        %1608 = vmatprep.subr.bf16.mxu0 0
        %1609 = vmatpush1.bf16.msra.mxu0 0
        %1610 = vmatprep.subr.bf16.mxu0 0
        %1611 = vmatpush1.bf16.msra.mxu0 0
        %1612 = vmatprep.subr.bf16.mxu0 0
        %1613 = vmatpush1.bf16.msra.mxu0 0
        %1614 = vmatprep.subr.bf16.mxu0 0
        %1615 = vmatpush1.bf16.msra.mxu0 %v1598
        %1616 = vmatprep.subr.bf16.mxu0 0
        %1617 = vmatpush2.bf16.msra.mxu0 0
        %1618 = vmatprep.subr.bf16.mxu0 0
        %1619 = vmatpush2.bf16.msra.mxu0 0
        %1620 = vmatprep.subr.bf16.mxu0 0
        %1621 = vmatpush2.bf16.msra.mxu0 0
        %1622 = vmatprep.subr.bf16.mxu0 0
        %1623 = vmatpush2.bf16.msra.mxu0 0
        %1624 = vmatprep.subr.bf16.mxu0 0
        %1625 = vmatpush2.bf16.msra.mxu0 0
        %1626 = vmatprep.subr.bf16.mxu0 0
        %1627 = vmatpush2.bf16.msra.mxu0 0
        %1628 = vmatprep.subr.bf16.mxu0 0
        %1629 = vmatpush2.bf16.msra.mxu0 0
        %1630 = vmatprep.subr.bf16.mxu0 0
        %1631 = vmatpush2.bf16.msra.mxu0 0
        %1632 = vmatprep.mubr.bf16.mxu0 0
        %1633 = vmatmul.mubr.bf16.gmra.mxu0 %v1594
        %v1634 = vpop.f32.mrf.mxu0
        %v1635 = vadd.f32 0.0, %v1634
        %v1636 = vpop.f32.mrf.mxu0
        %v1637 = vpop.f32.mrf.mxu0
        %v1638 = vpop.f32.mrf.mxu0
        %1639 = vdwg.mxu0
        %v1641 = vsel %vm1349, %v1590, 0
        %v1644 = vsel %vm1596, %v1346, 0
        %1646 = vmatprep.subr.bf16.mxu0 0
        %1647 = vmatpush1.bf16.msra.mxu0 0
        %1648 = vmatprep.subr.bf16.mxu0 0
        %1649 = vmatpush1.bf16.msra.mxu0 0
        %1650 = vmatprep.subr.bf16.mxu0 0
        %1651 = vmatpush1.bf16.msra.mxu0 0
        %1652 = vmatprep.subr.bf16.mxu0 0
        %1653 = vmatpush1.bf16.msra.mxu0 0
        %1654 = vmatprep.subr.bf16.mxu0 0
        %1655 = vmatpush1.bf16.msra.mxu0 0
        %1656 = vmatprep.subr.bf16.mxu0 0
        %1657 = vmatpush1.bf16.msra.mxu0 0
        %1658 = vmatprep.subr.bf16.mxu0 0
        %1659 = vmatpush1.bf16.msra.mxu0 0
        %1660 = vmatprep.subr.bf16.mxu0 0
        %1661 = vmatpush1.bf16.msra.mxu0 %v1644
        %1662 = vmatprep.subr.bf16.mxu0 0
        %1663 = vmatpush2.bf16.msra.mxu0 0
        %1664 = vmatprep.subr.bf16.mxu0 0
        %1665 = vmatpush2.bf16.msra.mxu0 0
        %1666 = vmatprep.subr.bf16.mxu0 0
        %1667 = vmatpush2.bf16.msra.mxu0 0
        %1668 = vmatprep.subr.bf16.mxu0 0
        %1669 = vmatpush2.bf16.msra.mxu0 0
        %1670 = vmatprep.subr.bf16.mxu0 0
        %1671 = vmatpush2.bf16.msra.mxu0 0
        %1672 = vmatprep.subr.bf16.mxu0 0
        %1673 = vmatpush2.bf16.msra.mxu0 0
        %1674 = vmatprep.subr.bf16.mxu0 0
        %1675 = vmatpush2.bf16.msra.mxu0 0
        %1676 = vmatprep.subr.bf16.mxu0 0
        %1677 = vmatpush2.bf16.msra.mxu0 0
        %1678 = vmatprep.mubr.bf16.mxu0 0
        %1679 = vmatmul.mubr.bf16.gmra.mxu0 %v1641
        %v1680 = vpop.f32.mrf.mxu0
        %v1681 = vadd.f32 0.0, %v1680
        %v1682 = vpop.f32.mrf.mxu0
        %v1683 = vpop.f32.mrf.mxu0
        %v1684 = vpop.f32.mrf.mxu0
        %1685 = vdwg.mxu0
        %v1687 = vsel %vm1349, %v1591, 0
        %v1690 = vsel %vm1596, %v1347, 0
        %1692 = vmatprep.subr.bf16.mxu0 0
        %1693 = vmatpush1.bf16.msra.mxu0 0
        %1694 = vmatprep.subr.bf16.mxu0 0
        %1695 = vmatpush1.bf16.msra.mxu0 0
        %1696 = vmatprep.subr.bf16.mxu0 0
        %1697 = vmatpush1.bf16.msra.mxu0 0
        %1698 = vmatprep.subr.bf16.mxu0 0
        %1699 = vmatpush1.bf16.msra.mxu0 0
        %1700 = vmatprep.subr.bf16.mxu0 0
        %1701 = vmatpush1.bf16.msra.mxu0 0
        %1702 = vmatprep.subr.bf16.mxu0 0
        %1703 = vmatpush1.bf16.msra.mxu0 0
        %1704 = vmatprep.subr.bf16.mxu0 0
        %1705 = vmatpush1.bf16.msra.mxu0 0
        %1706 = vmatprep.subr.bf16.mxu0 0
        %1707 = vmatpush1.bf16.msra.mxu0 %v1690
        %1708 = vmatprep.subr.bf16.mxu0 0
        %1709 = vmatpush2.bf16.msra.mxu0 0
        %1710 = vmatprep.subr.bf16.mxu0 0
        %1711 = vmatpush2.bf16.msra.mxu0 0
        %1712 = vmatprep.subr.bf16.mxu0 0
        %1713 = vmatpush2.bf16.msra.mxu0 0
        %1714 = vmatprep.subr.bf16.mxu0 0
        %1715 = vmatpush2.bf16.msra.mxu0 0
        %1716 = vmatprep.subr.bf16.mxu0 0
        %1717 = vmatpush2.bf16.msra.mxu0 0
        %1718 = vmatprep.subr.bf16.mxu0 0
        %1719 = vmatpush2.bf16.msra.mxu0 0
        %1720 = vmatprep.subr.bf16.mxu0 0
        %1721 = vmatpush2.bf16.msra.mxu0 0
        %1722 = vmatprep.subr.bf16.mxu0 0
        %1723 = vmatpush2.bf16.msra.mxu0 0
        %1724 = vmatprep.mubr.bf16.mxu0 0
        %1725 = vmatmul.mubr.bf16.gmra.mxu0 %v1687
        %v1726 = vpop.f32.mrf.mxu0
        %v1727 = vadd.f32 0.0, %v1726
        %v1728 = vpop.f32.mrf.mxu0
        %v1729 = vpop.f32.mrf.mxu0
        %v1730 = vpop.f32.mrf.mxu0
        %1731 = vdwg.mxu0
        %v1733 = vsel %vm1349, %v1592, 0
        %v1736 = vsel %vm1596, %v1348, 0
        %1738 = vmatprep.subr.bf16.mxu0 0
        %1739 = vmatpush1.bf16.msra.mxu0 0
        %1740 = vmatprep.subr.bf16.mxu0 0
        %1741 = vmatpush1.bf16.msra.mxu0 0
        %1742 = vmatprep.subr.bf16.mxu0 0
        %1743 = vmatpush1.bf16.msra.mxu0 0
        %1744 = vmatprep.subr.bf16.mxu0 0
        %1745 = vmatpush1.bf16.msra.mxu0 0
        %1746 = vmatprep.subr.bf16.mxu0 0
        %1747 = vmatpush1.bf16.msra.mxu0 0
        %1748 = vmatprep.subr.bf16.mxu0 0
        %1749 = vmatpush1.bf16.msra.mxu0 0
        %1750 = vmatprep.subr.bf16.mxu0 0
        %1751 = vmatpush1.bf16.msra.mxu0 0
        %1752 = vmatprep.subr.bf16.mxu0 0
        %1753 = vmatpush1.bf16.msra.mxu0 %v1736
        %1754 = vmatprep.subr.bf16.mxu0 0
        %1755 = vmatpush2.bf16.msra.mxu0 0
        %1756 = vmatprep.subr.bf16.mxu0 0
        %1757 = vmatpush2.bf16.msra.mxu0 0
        %1758 = vmatprep.subr.bf16.mxu0 0
        %1759 = vmatpush2.bf16.msra.mxu0 0
        %1760 = vmatprep.subr.bf16.mxu0 0
        %1761 = vmatpush2.bf16.msra.mxu0 0
        %1762 = vmatprep.subr.bf16.mxu0 0
        %1763 = vmatpush2.bf16.msra.mxu0 0
        %1764 = vmatprep.subr.bf16.mxu0 0
        %1765 = vmatpush2.bf16.msra.mxu0 0
        %1766 = vmatprep.subr.bf16.mxu0 0
        %1767 = vmatpush2.bf16.msra.mxu0 0
        %1768 = vmatprep.subr.bf16.mxu0 0
        %1769 = vmatpush2.bf16.msra.mxu0 0
        %1770 = vmatprep.mubr.bf16.mxu0 0
        %1771 = vmatmul.mubr.bf16.gmra.mxu0 %v1733
        %v1772 = vpop.f32.mrf.mxu0
        %v1773 = vadd.f32 0.0, %v1772
        %v1774 = vpop.f32.mrf.mxu0
        %v1775 = vpop.f32.mrf.mxu0
        %v1776 = vpop.f32.mrf.mxu0
        %1777 = vdwg.mxu0
        %v1778 = vpack.c.bf16 %v1635, %v1635
        %v1779 = vpack.c.bf16 %v1681, %v1681
        %v1780 = vpack.c.bf16 %v1727, %v1727
        %v1781 = vpack.c.bf16 %v1773, %v1773
        %v1782 = vld [vmem:[%s9] sm:$0xf]
        %v1783 = vld [vmem:[%s9 + $0x4] sm:$0xf]
        %v1784 = vld [vmem:[%s9 + $0x8] sm:$0xf]
        %v1785 = vld [vmem:[%s9 + $0xc] sm:$0xf]
        %v1787 = vsel %vm1349, %v1778, 0
        %v1790 = vsel %vm1596, %v1782, 0
        %1792 = vmatprep.subr.bf16.mxu0 0
        %1793 = vmatpush1.bf16.msra.mxu0 0
        %1794 = vmatprep.subr.bf16.mxu0 0
        %1795 = vmatpush1.bf16.msra.mxu0 0
        %1796 = vmatprep.subr.bf16.mxu0 0
        %1797 = vmatpush1.bf16.msra.mxu0 0
        %1798 = vmatprep.subr.bf16.mxu0 0
        %1799 = vmatpush1.bf16.msra.mxu0 0
        %1800 = vmatprep.subr.bf16.mxu0 0
        %1801 = vmatpush1.bf16.msra.mxu0 0
        %1802 = vmatprep.subr.bf16.mxu0 0
        %1803 = vmatpush1.bf16.msra.mxu0 0
        %1804 = vmatprep.subr.bf16.mxu0 0
        %1805 = vmatpush1.bf16.msra.mxu0 0
        %1806 = vmatprep.subr.bf16.mxu0 0
        %1807 = vmatpush1.bf16.msra.mxu0 %v1790
        %1808 = vmatprep.subr.bf16.mxu0 0
        %1809 = vmatpush2.bf16.msra.mxu0 0
        %1810 = vmatprep.subr.bf16.mxu0 0
        %1811 = vmatpush2.bf16.msra.mxu0 0
        %1812 = vmatprep.subr.bf16.mxu0 0
        %1813 = vmatpush2.bf16.msra.mxu0 0
        %1814 = vmatprep.subr.bf16.mxu0 0
        %1815 = vmatpush2.bf16.msra.mxu0 0
        %1816 = vmatprep.subr.bf16.mxu0 0
        %1817 = vmatpush2.bf16.msra.mxu0 0
        %1818 = vmatprep.subr.bf16.mxu0 0
        %1819 = vmatpush2.bf16.msra.mxu0 0
        %1820 = vmatprep.subr.bf16.mxu0 0
        %1821 = vmatpush2.bf16.msra.mxu0 0
        %1822 = vmatprep.subr.bf16.mxu0 0
        %1823 = vmatpush2.bf16.msra.mxu0 0
        %1824 = vmatprep.mubr.bf16.mxu0 0
        %1825 = vmatmul.mubr.bf16.gmra.mxu0 %v1787
        %v1826 = vpop.f32.mrf.mxu0
        %v1827 = vadd.f32 0.0, %v1826
        %v1828 = vpop.f32.mrf.mxu0
        %v1829 = vpop.f32.mrf.mxu0
        %v1830 = vpop.f32.mrf.mxu0
        %1831 = vdwg.mxu0
        %v1833 = vsel %vm1349, %v1779, 0
        %v1836 = vsel %vm1596, %v1783, 0
        %1838 = vmatprep.subr.bf16.mxu0 0
        %1839 = vmatpush1.bf16.msra.mxu0 0
        %1840 = vmatprep.subr.bf16.mxu0 0
        %1841 = vmatpush1.bf16.msra.mxu0 0
        %1842 = vmatprep.subr.bf16.mxu0 0
        %1843 = vmatpush1.bf16.msra.mxu0 0
        %1844 = vmatprep.subr.bf16.mxu0 0
        %1845 = vmatpush1.bf16.msra.mxu0 0
        %1846 = vmatprep.subr.bf16.mxu0 0
        %1847 = vmatpush1.bf16.msra.mxu0 0
        %1848 = vmatprep.subr.bf16.mxu0 0
        %1849 = vmatpush1.bf16.msra.mxu0 0
        %1850 = vmatprep.subr.bf16.mxu0 0
        %1851 = vmatpush1.bf16.msra.mxu0 0
        %1852 = vmatprep.subr.bf16.mxu0 0
        %1853 = vmatpush1.bf16.msra.mxu0 %v1836
        %1854 = vmatprep.subr.bf16.mxu0 0
        %1855 = vmatpush2.bf16.msra.mxu0 0
        %1856 = vmatprep.subr.bf16.mxu0 0
        %1857 = vmatpush2.bf16.msra.mxu0 0
        %1858 = vmatprep.subr.bf16.mxu0 0
        %1859 = vmatpush2.bf16.msra.mxu0 0
        %1860 = vmatprep.subr.bf16.mxu0 0
        %1861 = vmatpush2.bf16.msra.mxu0 0
        %1862 = vmatprep.subr.bf16.mxu0 0
        %1863 = vmatpush2.bf16.msra.mxu0 0
        %1864 = vmatprep.subr.bf16.mxu0 0
        %1865 = vmatpush2.bf16.msra.mxu0 0
        %1866 = vmatprep.subr.bf16.mxu0 0
        %1867 = vmatpush2.bf16.msra.mxu0 0
        %1868 = vmatprep.subr.bf16.mxu0 0
        %1869 = vmatpush2.bf16.msra.mxu0 0
        %1870 = vmatprep.mubr.bf16.mxu0 0
        %1871 = vmatmul.mubr.bf16.gmra.mxu0 %v1833
        %v1872 = vpop.f32.mrf.mxu0
        %v1873 = vadd.f32 0.0, %v1872
        %v1874 = vpop.f32.mrf.mxu0
        %v1875 = vpop.f32.mrf.mxu0
        %v1876 = vpop.f32.mrf.mxu0
        %1877 = vdwg.mxu0
        %v1879 = vsel %vm1349, %v1780, 0
        %v1882 = vsel %vm1596, %v1784, 0
        %1884 = vmatprep.subr.bf16.mxu0 0
        %1885 = vmatpush1.bf16.msra.mxu0 0
        %1886 = vmatprep.subr.bf16.mxu0 0
        %1887 = vmatpush1.bf16.msra.mxu0 0
        %1888 = vmatprep.subr.bf16.mxu0 0
        %1889 = vmatpush1.bf16.msra.mxu0 0
        %1890 = vmatprep.subr.bf16.mxu0 0
        %1891 = vmatpush1.bf16.msra.mxu0 0
        %1892 = vmatprep.subr.bf16.mxu0 0
        %1893 = vmatpush1.bf16.msra.mxu0 0
        %1894 = vmatprep.subr.bf16.mxu0 0
        %1895 = vmatpush1.bf16.msra.mxu0 0
        %1896 = vmatprep.subr.bf16.mxu0 0
        %1897 = vmatpush1.bf16.msra.mxu0 0
        %1898 = vmatprep.subr.bf16.mxu0 0
        %1899 = vmatpush1.bf16.msra.mxu0 %v1882
        %1900 = vmatprep.subr.bf16.mxu0 0
        %1901 = vmatpush2.bf16.msra.mxu0 0
        %1902 = vmatprep.subr.bf16.mxu0 0
        %1903 = vmatpush2.bf16.msra.mxu0 0
        %1904 = vmatprep.subr.bf16.mxu0 0
        %1905 = vmatpush2.bf16.msra.mxu0 0
        %1906 = vmatprep.subr.bf16.mxu0 0
        %1907 = vmatpush2.bf16.msra.mxu0 0
        %1908 = vmatprep.subr.bf16.mxu0 0
        %1909 = vmatpush2.bf16.msra.mxu0 0
        %1910 = vmatprep.subr.bf16.mxu0 0
        %1911 = vmatpush2.bf16.msra.mxu0 0
        %1912 = vmatprep.subr.bf16.mxu0 0
        %1913 = vmatpush2.bf16.msra.mxu0 0
        %1914 = vmatprep.subr.bf16.mxu0 0
        %1915 = vmatpush2.bf16.msra.mxu0 0
        %1916 = vmatprep.mubr.bf16.mxu0 0
        %1917 = vmatmul.mubr.bf16.gmra.mxu0 %v1879
        %v1918 = vpop.f32.mrf.mxu0
        %v1919 = vadd.f32 0.0, %v1918
        %v1920 = vpop.f32.mrf.mxu0
        %v1921 = vpop.f32.mrf.mxu0
        %v1922 = vpop.f32.mrf.mxu0
        %1923 = vdwg.mxu0
        %v1925 = vsel %vm1349, %v1781, 0
        %v1928 = vsel %vm1596, %v1785, 0
        %1930 = vmatprep.subr.bf16.mxu0 0
        %1931 = vmatpush1.bf16.msra.mxu0 0
        %1932 = vmatprep.subr.bf16.mxu0 0
        %1933 = vmatpush1.bf16.msra.mxu0 0
        %1934 = vmatprep.subr.bf16.mxu0 0
        %1935 = vmatpush1.bf16.msra.mxu0 0
        %1936 = vmatprep.subr.bf16.mxu0 0
        %1937 = vmatpush1.bf16.msra.mxu0 0
        %1938 = vmatprep.subr.bf16.mxu0 0
        %1939 = vmatpush1.bf16.msra.mxu0 0
        %1940 = vmatprep.subr.bf16.mxu0 0
        %1941 = vmatpush1.bf16.msra.mxu0 0
        %1942 = vmatprep.subr.bf16.mxu0 0
        %1943 = vmatpush1.bf16.msra.mxu0 0
        %1944 = vmatprep.subr.bf16.mxu0 0
        %1945 = vmatpush1.bf16.msra.mxu0 %v1928
        %1946 = vmatprep.subr.bf16.mxu0 0
        %1947 = vmatpush2.bf16.msra.mxu0 0
        %1948 = vmatprep.subr.bf16.mxu0 0
        %1949 = vmatpush2.bf16.msra.mxu0 0
        %1950 = vmatprep.subr.bf16.mxu0 0
        %1951 = vmatpush2.bf16.msra.mxu0 0
        %1952 = vmatprep.subr.bf16.mxu0 0
        %1953 = vmatpush2.bf16.msra.mxu0 0
        %1954 = vmatprep.subr.bf16.mxu0 0
        %1955 = vmatpush2.bf16.msra.mxu0 0
        %1956 = vmatprep.subr.bf16.mxu0 0
        %1957 = vmatpush2.bf16.msra.mxu0 0
        %1958 = vmatprep.subr.bf16.mxu0 0
        %1959 = vmatpush2.bf16.msra.mxu0 0
        %1960 = vmatprep.subr.bf16.mxu0 0
        %1961 = vmatpush2.bf16.msra.mxu0 0
        %1962 = vmatprep.mubr.bf16.mxu0 0
        %1963 = vmatmul.mubr.bf16.gmra.mxu0 %v1925
        %v1964 = vpop.f32.mrf.mxu0
        %v1965 = vadd.f32 0.0, %v1964
        %v1966 = vpop.f32.mrf.mxu0
        %v1967 = vpop.f32.mrf.mxu0
        %v1968 = vpop.f32.mrf.mxu0
        %1969 = vdwg.mxu0
        %v1970 = vsel %vm548, %v1827, 0.0
        %v1971 = vsel %vm548, %v1873, 0.0
        %v1972 = vadd.f32 %v1970, %v1971
        %v1973 = vsel %vm548, %v1919, 0.0
        %v1974 = vadd.f32 %v1972, %v1973
        %v1975 = vsel %vm548, %v1965, 0.0
        %v1976 = vadd.f32 %v1974, %v1975
        %v1977 = vld [vmem:[%s10] sm:$0x1]
        %v1979 = vlaneseq
        %v1980 = vshrl.u32 %v1979, 7
        %v1981 = vsub.s32 0, %v1980
        %v1982 = vrot.slane %v1977, %v1981
        %v1984 = vadd.f32 %v1976, %v1982
        %v1985 = vadd.f32 %v545, %v1984
        %v1986 = vld [vmem:[%s11] sm:$0x1]
        %v1987 = vld [vmem:[%s12] sm:$0x1]
        %v1988 = vsel %vm548, %v1985, 0.0
        %1989 = vadd.xlane.f32.xlu0 %v1988
        %v1990 = vpop.xlane.xlu0 %1989
        %v1991 = vmul.f32 %v1990, %v552
        %v1992 = vsub.f32 %v1985, %v1991
        %v1993 = vmul.f32 %v1992, %v1992
        %v1994 = vsel %vm548, %v1993, 0.0
        %1995 = vadd.xlane.f32.xlu0 %v1994
        %v1996 = vpop.xlane.xlu0 %1995
        %v1997 = vmul.f32 %v1996, %v552
        %v1998 = vadd.f32 %v1997, 1e-05
        %v1999 = vrsqrt.pop %v1998
        %v2000 = vmul.f32 %v1992, %v1999
        %v2002 = vlaneseq
        %v2003 = vshrl.u32 %v2002, 7
        %v2004 = vsub.s32 0, %v2003
        %v2005 = vrot.slane %v1986, %v2004
        %v2007 = vmul.f32 %v2000, %v2005
        %v2009 = vlaneseq
        %v2010 = vshrl.u32 %v2009, 7
        %v2011 = vsub.s32 0, %v2010
        %v2012 = vrot.slane %v1987, %v2011
        %v2014 = vadd.f32 %v2007, %v2012
        %v2015 = vpack.c.bf16 %v2014, %v2014
        %v2016 = vld [vmem:[%s13] sm:$0xf]
        %v2017 = vld [vmem:[%s13 + $0x4] sm:$0xf]
        %v2018 = vld [vmem:[%s13 + $0x8] sm:$0xf]
        %v2019 = vld [vmem:[%s13 + $0xc] sm:$0xf]
        %v2020 = vld [vmem:[%s14] sm:$0x1]
        %v2022 = vlaneseq
        %v2023 = vshrl.u32 %v2022, 7
        %v2024 = vsub.s32 0, %v2023
        %v2025 = vrot.slane %v2020, %v2024
        %v2031 = vunpack.c.l.b16 %v2016
        %v2032 = vunpack.c.l.b16 %v2017
        %v2033 = vunpack.c.l.b16 %v2018
        %v2034 = vunpack.c.l.b16 %v2019
        %v2035 = vpack.c.b16 %v2032, %v2031
        %v2036 = vpack.c.b16 %v2034, %v2033
        %v2040 = vsel %vm548, %v2015, 0
        %2042 = vmatprep.subr.bf16.mxu0 0
        %2043 = vmatpush1.bf16.msra.mxu0 0
        %2044 = vmatprep.subr.bf16.mxu0 0
        %2045 = vmatpush1.bf16.msra.mxu0 0
        %2046 = vmatprep.subr.bf16.mxu0 0
        %2047 = vmatpush1.bf16.msra.mxu0 0
        %2048 = vmatprep.subr.bf16.mxu0 0
        %2049 = vmatpush1.bf16.msra.mxu0 0
        %2050 = vmatprep.subr.bf16.mxu0 0
        %2051 = vmatpush1.bf16.msra.mxu0 0
        %2052 = vmatprep.subr.bf16.mxu0 0
        %2053 = vmatpush1.bf16.msra.mxu0 0
        %2054 = vmatprep.subr.bf16.mxu0 0
        %2055 = vmatpush1.bf16.msra.mxu0 %v2036
        %2056 = vmatprep.subr.bf16.mxu0 0
        %2057 = vmatpush1.bf16.msra.mxu0 %v2035
        %2058 = vmatprep.subr.bf16.mxu0 0
        %2059 = vmatpush2.bf16.msra.mxu0 0
        %2060 = vmatprep.subr.bf16.mxu0 0
        %2061 = vmatpush2.bf16.msra.mxu0 0
        %2062 = vmatprep.subr.bf16.mxu0 0
        %2063 = vmatpush2.bf16.msra.mxu0 0
        %2064 = vmatprep.subr.bf16.mxu0 0
        %2065 = vmatpush2.bf16.msra.mxu0 0
        %2066 = vmatprep.subr.bf16.mxu0 0
        %2067 = vmatpush2.bf16.msra.mxu0 0
        %2068 = vmatprep.subr.bf16.mxu0 0
        %2069 = vmatpush2.bf16.msra.mxu0 0
        %2070 = vmatprep.subr.bf16.mxu0 0
        %2071 = vmatpush2.bf16.msra.mxu0 0
        %2072 = vmatprep.subr.bf16.mxu0 0
        %2073 = vmatpush2.bf16.msra.mxu0 0
        %2074 = vmatprep.mubr.bf16.mxu0 0
        %2075 = vmatmul.mubr.bf16.gmra.mxu0 %v2040
        %v2076 = vpop.f32.mrf.mxu0
        %v2077 = vadd.f32 %v2025, %v2076
        %v2078 = vpop.f32.mrf.mxu0
        %v2079 = vpop.f32.mrf.mxu0
        %v2080 = vpop.f32.mrf.mxu0
        %2081 = vdwg.mxu0
        %v2082 = vmax.f32 %v2077, 0.0
        %v2083 = vpack.c.bf16 %v2082, %v2082
        %v2084 = vld [vmem:[%s15] sm:$0xf]
        %v2085 = vld [vmem:[%s15 + $0x4] sm:$0xf]
        %v2086 = vld [vmem:[%s15 + $0x8] sm:$0xf]
        %v2087 = vld [vmem:[%s15 + $0xc] sm:$0xf]
        %v2088 = vld [vmem:[%s15 + $0x10] sm:$0xf]
        %v2089 = vld [vmem:[%s15 + $0x14] sm:$0xf]
        %v2090 = vld [vmem:[%s15 + $0x18] sm:$0xf]
        %v2091 = vld [vmem:[%s15 + $0x1c] sm:$0xf]
        %v2092 = vld [vmem:[%s15 + $0x20] sm:$0xf]
        %v2093 = vld [vmem:[%s15 + $0x24] sm:$0xf]
        %v2094 = vld [vmem:[%s15 + $0x28] sm:$0xf]
        %v2095 = vld [vmem:[%s15 + $0x2c] sm:$0xf]
        %v2096 = vld [vmem:[%s15 + $0x30] sm:$0xf]
        %v2097 = vld [vmem:[%s15 + $0x34] sm:$0xf]
        %v2098 = vld [vmem:[%s15 + $0x38] sm:$0xf]
        %v2099 = vld [vmem:[%s15 + $0x3c] sm:$0xf]
        %v2100 = vld [vmem:[%s16] sm:$0x1]
        %v2102 = vlaneseq
        %v2103 = vshrl.u32 %v2102, 7
        %v2104 = vsub.s32 0, %v2103
        %v2105 = vrot.slane %v2100, %v2104
        %v2123 = vunpack.c.l.b16 %v2084
        %v2124 = vunpack.c.l.b16 %v2085
        %v2125 = vunpack.c.l.b16 %v2086
        %v2126 = vunpack.c.l.b16 %v2087
        %v2127 = vunpack.c.l.b16 %v2088
        %v2128 = vunpack.c.l.b16 %v2089
        %v2129 = vunpack.c.l.b16 %v2090
        %v2130 = vunpack.c.l.b16 %v2091
        %v2131 = vunpack.c.l.b16 %v2092
        %v2132 = vunpack.c.l.b16 %v2093
        %v2133 = vunpack.c.l.b16 %v2094
        %v2134 = vunpack.c.l.b16 %v2095
        %v2135 = vunpack.c.l.b16 %v2096
        %v2136 = vunpack.c.l.b16 %v2097
        %v2137 = vunpack.c.l.b16 %v2098
        %v2138 = vunpack.c.l.b16 %v2099
        %v2139 = vpack.c.b16 %v2124, %v2123
        %v2140 = vpack.c.b16 %v2126, %v2125
        %v2141 = vpack.c.b16 %v2128, %v2127
        %v2142 = vpack.c.b16 %v2130, %v2129
        %v2143 = vpack.c.b16 %v2132, %v2131
        %v2144 = vpack.c.b16 %v2134, %v2133
        %v2145 = vpack.c.b16 %v2136, %v2135
        %v2146 = vpack.c.b16 %v2138, %v2137
        %2155 = vmatprep.subr.bf16.mxu0 0
        %2156 = vmatpush1.bf16.msra.mxu0 %v2146
        %2157 = vmatprep.subr.bf16.mxu0 0
        %2158 = vmatpush1.bf16.msra.mxu0 %v2145
        %2159 = vmatprep.subr.bf16.mxu0 0
        %2160 = vmatpush1.bf16.msra.mxu0 %v2144
        %2161 = vmatprep.subr.bf16.mxu0 0
        %2162 = vmatpush1.bf16.msra.mxu0 %v2143
        %2163 = vmatprep.subr.bf16.mxu0 0
        %2164 = vmatpush1.bf16.msra.mxu0 %v2142
        %2165 = vmatprep.subr.bf16.mxu0 0
        %2166 = vmatpush1.bf16.msra.mxu0 %v2141
        %2167 = vmatprep.subr.bf16.mxu0 0
        %2168 = vmatpush1.bf16.msra.mxu0 %v2140
        %2169 = vmatprep.subr.bf16.mxu0 0
        %2170 = vmatpush1.bf16.msra.mxu0 %v2139
        %2171 = vmatprep.subr.bf16.mxu0 0
        %2172 = vmatpush2.bf16.msra.mxu0 0
        %2173 = vmatprep.subr.bf16.mxu0 0
        %2174 = vmatpush2.bf16.msra.mxu0 0
        %2175 = vmatprep.subr.bf16.mxu0 0
        %2176 = vmatpush2.bf16.msra.mxu0 0
        %2177 = vmatprep.subr.bf16.mxu0 0
        %2178 = vmatpush2.bf16.msra.mxu0 0
        %2179 = vmatprep.subr.bf16.mxu0 0
        %2180 = vmatpush2.bf16.msra.mxu0 0
        %2181 = vmatprep.subr.bf16.mxu0 0
        %2182 = vmatpush2.bf16.msra.mxu0 0
        %2183 = vmatprep.subr.bf16.mxu0 0
        %2184 = vmatpush2.bf16.msra.mxu0 0
        %2185 = vmatprep.subr.bf16.mxu0 0
        %2186 = vmatpush2.bf16.msra.mxu0 0
        %2187 = vmatprep.mubr.bf16.mxu0 0
        %2188 = vmatmul.mubr.bf16.gmra.mxu0 %v2083
        %v2189 = vpop.f32.mrf.mxu0
        %v2190 = vadd.f32 %v2105, %v2189
        %v2191 = vpop.f32.mrf.mxu0
        %v2192 = vpop.f32.mrf.mxu0
        %v2193 = vpop.f32.mrf.mxu0
        %2194 = vdwg.mxu0
        %v2195 = vadd.f32 %v1985, %v2190
        %2196 = vst.msk [vmem:[%s539] sm:$0xff] %vm548, %v2195
        %s2197 = sand.u32 %s401, 1
        %s2198 = scalar_lea.sflag [#allocation3], %s2197
        %s2199 = sand.u32 %s401, 1
        %s2200 = smul.addr %s2199, 8
        %s2201 = scalar_lea.vmem [#allocation2], %s2200
        // Predicated region
        $region89: #{tpu_custom_call.1} parent=87 // pred_check
          %p2202 = pneg %p411
        $region90: #{tpu_custom_call.1} parent=87 // pred_check_branch
          %2204 = sbr.rel (%p2202) target = $region92
        $region91: #{tpu_custom_call.1} parent=87 // pred_region
          %s2206 = ssub.s32 128, 128
          %2207 = vsyncadd %s2198, %s2206
          %s2208 = smul.addr %s31, 128
          %s2209 = scalar_lea.hbm %s17, %s2208
          %s2211 = sshll.u32 %s2201, 4
          %s2212 = int_to_ptr.vmem [resolvable:$true] %s2211
          %2214 = dma.vmem_to_hbm [thread:$0]  %s2212, 128, %s2209, %s2198
        $region92: #{tpu_custom_call.1} parent=87 // pred_fallthru
          _
      $region88: #{tpu_custom_call.1} parent=5 // pred_fallthru
        _
      %p2215 = scmp.le.s32.totalorder 2, %s26
      // Predicated region
      $region93: #{tpu_custom_call.1} parent=5 // pred_check
        %p2216 = pneg %p2215
      $region94: #{tpu_custom_call.1} parent=5 // pred_check_branch
        %2218 = sbr.rel (%p2216) target = $region96
      $region95: #{tpu_custom_call.1} parent=5 // pred_region
        %s2219 = ssub.s32 %s26, 2
        // Predicated region
        $region97: #{tpu_custom_call.1} parent=95 // pred_check
          %p2220 = pneg %p417
        $region98: #{tpu_custom_call.1} parent=95 // pred_check_branch
          %2222 = sbr.rel (%p2220) target = $region100
        $region99: #{tpu_custom_call.1} parent=95 // pred_region
          %s2223 = sand.u32 %s402, 1
          %s2224 = scalar_lea.sflag [#allocation3], %s2223
          %s2225 = sand.u32 %s402, 1
          %s2226 = smul.addr %s2225, 8
          %s2227 = scalar_lea.vmem [#allocation2], %s2226
          %2228 = dma.done %s2224, 128
        $region100: #{tpu_custom_call.1} parent=95 // pred_fallthru
          _
      $region96: #{tpu_custom_call.1} parent=5 // pred_fallthru
        _
    $region6: #{tpu_custom_call.1} parent=1 // loop_footer
      %s30 = sadd.s32 1, %s26
    $region7: #{tpu_custom_call.1} parent=1 // loop_footer_branch
      %25 = sbr.rel target = $region3
    $region8: #{tpu_custom_call.1} parent=1 // loop_exit
      _
    %2229 = vsyncpa [#allocation3], 1
    %s2230 = scalar_lea.sflag [#allocation3], 1
    %2231 = vsyncpa %s2230, 1

</llo_original>
